<compile_context>
chip_gen: v5e
topology: v5e:2x2
jax: 0.10.0
libtpu: 0.0.40
codegen_flags: <defaults>
</compile_context>

<pallas_src>
import functools

import jax
import jax.numpy as jnp
from jax.experimental import pallas as pl
from jax.experimental.pallas import tpu as pltpu

LN_EPS = 1e-5
INV_SQRT2 = 0.7071067811865476
NEG_INF = -1e30  # finite sentinel; exp() still flushes masked scores to 0


def _layernorm(x, gamma, beta):
    mean = jnp.mean(x, axis=-1, keepdims=True)
    var = jnp.mean((x - mean) ** 2, axis=-1, keepdims=True)
    return (x - mean) * jax.lax.rsqrt(var + LN_EPS) * gamma + beta


# ----------------------- fused attention block kernel ------------------------
# One grid step = one batch element. Everything (QKV proj, per-head causal
# attention, output proj, residual) happens on VMEM-resident tiles.

def attn_block_kernel(x_ref, wqkv_ref, wout_ref, o_ref, *, heads, dim_head, scale):
    x = x_ref[0]                                            # [N, D]
    n = x.shape[0]
    hd = heads * dim_head

    # x @ Wqkv : [N, 3*H*d]   (bias-free, like the reference to_qkv)
    qkv = jax.lax.dot_general(x, wqkv_ref[...], (((1,), (0,)), ((), ())),
                              preferred_element_type=jnp.float32)

    row = jax.lax.broadcasted_iota(jnp.int32, (n, n), 0)
    col = jax.lax.broadcasted_iota(jnp.int32, (n, n), 1)
    causal = col > row                                      # triu(1)

    head_outs = []
    for h in range(heads):                                  # static loop over heads
        lo = h * dim_head
        q = qkv[:, lo:lo + dim_head] * scale
        k = qkv[:, hd + lo:hd + lo + dim_head]
        v = qkv[:, 2 * hd + lo:2 * hd + lo + dim_head]
        # q @ k^T : contract last axes of both operands (no materialized .T)
        sim = jax.lax.dot_general(q, k, (((1,), (1,)), ((), ())),
                                  preferred_element_type=jnp.float32)
        sim = jnp.where(causal, NEG_INF, sim)
        sim = sim - jnp.max(sim, axis=-1, keepdims=True)
        p = jnp.exp(sim)
        p = p * pl.reciprocal(jnp.sum(p, axis=-1, keepdims=True), approx=True)
        head_outs.append(jnp.dot(p, v, preferred_element_type=jnp.float32))

    out = jnp.concatenate(head_outs, axis=-1)               # [N, H*d] lane-dense
    out = jnp.dot(out, wout_ref[...], preferred_element_type=jnp.float32)  # [N, D]
    o_ref[0] = out + x                                      # fused residual


def attention_block(x, w_qkv, w_out, *, heads, dim_head):
    B, N, D = x.shape
    hd3 = w_qkv.shape[1]
    hd = heads * dim_head
    return pl.pallas_call(
        functools.partial(attn_block_kernel, heads=heads, dim_head=dim_head,
                          scale=dim_head ** -0.5),
        grid=(B,),
        in_specs=[
            pl.BlockSpec((1, N, D), lambda b: (b, 0, 0)),
            pl.BlockSpec((D, hd3), lambda b: (0, 0)),
            pl.BlockSpec((hd, D), lambda b: (0, 0)),
        ],
        out_specs=pl.BlockSpec((1, N, D), lambda b: (b, 0, 0)),
        out_shape=jax.ShapeDtypeStruct((B, N, D), jnp.float32),
        compiler_params=pltpu.CompilerParams(dimension_semantics=("parallel",)),
    )(x, w_qkv, w_out)


# ------------------------ fused feed-forward kernel ---------------------------

def ffn_block_kernel(x_ref, g_ref, bt_ref, w1_ref, b1_ref, w2_ref, b2_ref, o_ref):
    x = x_ref[0]                                            # [N, D]
    h = _layernorm(x, g_ref[...], bt_ref[...])
    h = jnp.dot(h, w1_ref[...], preferred_element_type=jnp.float32) + b1_ref[...]
    h = 0.5 * h * (1.0 + jax.lax.erf(h * INV_SQRT2))        # exact GELU (erf)
    h = jnp.dot(h, w2_ref[...], preferred_element_type=jnp.float32) + b2_ref[...]
    o_ref[0] = h + x                                        # fused residual


def feedforward_block(x, ln_g, ln_b, w1, b1, w2, b2):
    B, N, D = x.shape
    hid = w1.shape[1]
    return pl.pallas_call(
        ffn_block_kernel,
        grid=(B,),
        in_specs=[
            pl.BlockSpec((1, N, D), lambda b: (b, 0, 0)),
            pl.BlockSpec((1, D), lambda b: (0, 0)),
            pl.BlockSpec((1, D), lambda b: (0, 0)),
            pl.BlockSpec((D, hid), lambda b: (0, 0)),
            pl.BlockSpec((1, hid), lambda b: (0, 0)),
            pl.BlockSpec((hid, D), lambda b: (0, 0)),
            pl.BlockSpec((1, D), lambda b: (0, 0)),
        ],
        out_specs=pl.BlockSpec((1, N, D), lambda b: (b, 0, 0)),
        out_shape=jax.ShapeDtypeStruct((B, N, D), jnp.float32),
        compiler_params=pltpu.CompilerParams(dimension_semantics=("parallel",)),
    )(x, ln_g.reshape(1, D), ln_b.reshape(1, D), w1, b1.reshape(1, hid),
      w2, b2.reshape(1, D))


# --------------- fused final LayerNorm + logits + cross-entropy ---------------
# Loss path never writes the [B, N, V] logits tensor to HBM.

def lm_loss_kernel(x_ref, lbl_ref, g_ref, bt_ref, w_ref, b_ref, loss_ref):
    x = x_ref[0]                                            # [N, D]
    h = _layernorm(x, g_ref[...], bt_ref[...])
    logits = jnp.dot(h, w_ref[...], preferred_element_type=jnp.float32) + b_ref[...]
    m = jnp.max(logits, axis=-1, keepdims=True)
    lse = jnp.log(jnp.sum(jnp.exp(logits - m), axis=-1, keepdims=True)) + m
    labels = lbl_ref[0]                                     # [N, 1] int32
    col = jax.lax.broadcasted_iota(jnp.int32, logits.shape, 1)
    picked = jnp.sum(jnp.where(col == labels, logits, 0.0), axis=-1, keepdims=True)
    loss_ref[0] = lse - picked                              # [N, 1] per-row NLL


def lm_loss(x, labels, ln_g, ln_b, w, b):
    B, N, D = x.shape
    V = w.shape[1]
    per_row = pl.pallas_call(
        lm_loss_kernel,
        grid=(B,),
        in_specs=[
            pl.BlockSpec((1, N, D), lambda b: (b, 0, 0)),
            pl.BlockSpec((1, N, 1), lambda b: (b, 0, 0)),
            pl.BlockSpec((1, D), lambda b: (0, 0)),
            pl.BlockSpec((1, D), lambda b: (0, 0)),
            pl.BlockSpec((D, V), lambda b: (0, 0)),
            pl.BlockSpec((1, V), lambda b: (0, 0)),
        ],
        out_specs=pl.BlockSpec((1, N, 1), lambda b: (b, 0, 0)),
        out_shape=jax.ShapeDtypeStruct((B, N, 1), jnp.float32),
        compiler_params=pltpu.CompilerParams(dimension_semantics=("parallel",)),
    )(x, labels.reshape(B, N, 1).astype(jnp.int32), ln_g.reshape(1, D),
      ln_b.reshape(1, D), w, b.reshape(1, V))
    return jnp.mean(per_row)                                # F.cross_entropy mean


# ---------------------- logits path (return_loss=False) -----------------------

def logits_kernel(x_ref, g_ref, bt_ref, w_ref, b_ref, o_ref):
    h = _layernorm(x_ref[0], g_ref[...], bt_ref[...])
    o_ref[0] = jnp.dot(h, w_ref[...], preferred_element_type=jnp.float32) + b_ref[...]


def to_logits(x, ln_g, ln_b, w, b):
    B, N, D = x.shape
    V = w.shape[1]
    return pl.pallas_call(
        logits_kernel,
        grid=(B,),
        in_specs=[
            pl.BlockSpec((1, N, D), lambda b: (b, 0, 0)),
            pl.BlockSpec((1, D), lambda b: (0, 0)),
            pl.BlockSpec((1, D), lambda b: (0, 0)),
            pl.BlockSpec((D, V), lambda b: (0, 0)),
            pl.BlockSpec((1, V), lambda b: (0, 0)),
        ],
        out_specs=pl.BlockSpec((1, N, V), lambda b: (b, 0, 0)),
        out_shape=jax.ShapeDtypeStruct((B, N, V), jnp.float32),
        compiler_params=pltpu.CompilerParams(dimension_semantics=("parallel",)),
    )(x, ln_g.reshape(1, D), ln_b.reshape(1, D), w, b.reshape(1, V))


# ------------------------------ forward pass ----------------------------------

def transformer_forward(tokens, params, *, heads, dim_head, return_loss=True):
    if return_loss:
        x_tok, labels = tokens[:, :-1], tokens[:, 1:]
    else:
        x_tok, labels = tokens, None
    B, N = x_tok.shape

    # Embedding gathers are glue (plain JAX).
    # TODO(synk): token_emb gather has no clean Pallas equivalent at this scale.
    x = params["token_emb"][x_tok] + params["pos_emb"][:N][None, :, :]

    for layer in params["layers"]:
        x = attention_block(x, layer["w_qkv"], layer["w_out"],
                            heads=heads, dim_head=dim_head)      # residual fused
        x = feedforward_block(x, layer["ln_g"], layer["ln_b"],
                              layer["w1"], layer["b1"],
                              layer["w2"], layer["b2"])          # residual fused

    if not return_loss:
        return to_logits(x, params["fin_ln_g"], params["fin_ln_b"],
                         params["w_logits"], params["b_logits"])
    return lm_loss(x, labels, params["fin_ln_g"], params["fin_ln_b"],
                   params["w_logits"], params["b_logits"])


# ------------------------------- parameters -----------------------------------

def init_params(key, *, num_tokens, dim, depth, seq_len, heads, dim_head, mult=4):
    dim_inner = heads * dim_head

    def nrm(k, shape, scale=0.02):
        return jax.random.normal(k, shape, dtype=jnp.float32) * scale

    keys = iter(jax.random.split(key, 3 + depth * 4))
    params = {
        "token_emb": nrm(next(keys), (num_tokens, dim)),
        "pos_emb": nrm(next(keys), (seq_len, dim)),
        "layers": [],
        "fin_ln_g": jnp.ones((dim,), jnp.float32),
        "fin_ln_b": jnp.zeros((dim,), jnp.float32),
    }
    for _ in range(depth):
        params["layers"].append({
            "w_qkv": nrm(next(keys), (dim, 3 * dim_inner)),
            "w_out": nrm(next(keys), (dim_inner, dim)),
            "ln_g": jnp.ones((dim,), jnp.float32),
            "ln_b": jnp.zeros((dim,), jnp.float32),
            "w1": nrm(next(keys), (dim, dim * mult)),
            "b1": jnp.zeros((dim * mult,), jnp.float32),
            "w2": nrm(next(keys), (dim * mult, dim)),
            "b2": jnp.zeros((dim,), jnp.float32),
        })
    params["w_logits"] = nrm(next(keys), (dim, num_tokens))
    params["b_logits"] = jnp.zeros((num_tokens,), jnp.float32)
    return params


# ---------------------------------- main ---------------------------------------

if __name__ == "__main__":
    B, SEQ_LEN, NUM_TOKENS = 2, 8, 256
    DIM, DEPTH, HEADS, DIM_HEAD = 32, 2, 4, 16

    key = jax.random.PRNGKey(0)
    k_params, k_tok = jax.random.split(key)
    params = init_params(k_params, num_tokens=NUM_TOKENS, dim=DIM, depth=DEPTH,
                         seq_len=SEQ_LEN, heads=HEADS, dim_head=DIM_HEAD)

    # forward consumes tokens[:, :-1] and predicts tokens[:, 1:]
    tokens = jax.random.randint(k_tok, (B, SEQ_LEN + 1), 0, NUM_TOKENS,
                                dtype=jnp.int32)

    fwd = jax.jit(functools.partial(transformer_forward, heads=HEADS,
                                    dim_head=DIM_HEAD, return_loss=True))
    loss = fwd(tokens, params)
    jax.block_until_ready(loss)
    print("KERNEL_OK")
</pallas_src>

<mosaic_0001>
module attributes {stable_mosaic.version = 11 : i64} {
  func.func @attn_block_kernel(%arg0: i32, %arg1: memref<1x8x32xf32, #tpu.memory_space<vmem>>, %arg2: memref<32x192xf32, #tpu.memory_space<vmem>>, %arg3: memref<64x32xf32, #tpu.memory_space<vmem>>, %arg4: memref<1x8x32xf32, #tpu.memory_space<vmem>>) attributes {dimension_semantics = [#tpu.dimension_semantics<parallel>], iteration_bounds = array<i64: 2>, scalar_prefetch = 0 : i64, scratch_operands = 0 : i64, tpu.core_type = #tpu.core_type<tc>, window_params = [{transform_indices = @transform_0, window_bounds = array<i64: 1, 8, 32>}, {pipeline_mode = #tpu.pipeline_mode<synchronous>, transform_indices = @transform_1, window_bounds = array<i64: 32, 192>}, {pipeline_mode = #tpu.pipeline_mode<synchronous>, transform_indices = @transform_2, window_bounds = array<i64: 64, 32>}, {transform_indices = @transform_3, window_bounds = array<i64: 1, 8, 32>}]} {
    %c0 = arith.constant 0 : index
    %c0_0 = arith.constant 0 : index
    %c0_1 = arith.constant 0 : index
    %0 = vector.load %arg1[%c0, %c0_0, %c0_1] : memref<1x8x32xf32, #tpu.memory_space<vmem>>, vector<1x8x32xf32>
    %1 = vector.shape_cast %0 : vector<1x8x32xf32> to vector<8x32xf32>
    %c0_2 = arith.constant 0 : index
    %c0_3 = arith.constant 0 : index
    %2 = vector.load %arg2[%c0_2, %c0_3] : memref<32x192xf32, #tpu.memory_space<vmem>>, vector<32x192xf32>
    %cst = arith.constant dense<0.000000e+00> : vector<8x192xf32>
    %3 = tpu.matmul %1, %2, %cst {dimension_numbers = #tpu.dot_dimension_numbers<[1], [0], [0], [1], [0, 0, 1, 1], [], []>} : vector<8x32xf32>, vector<32x192xf32>, vector<8x192xf32> -> vector<8x192xf32>
    %4 = tpu.iota {dimensions = array<i32: 0>} : vector<8x8xi32>
    %5 = tpu.iota {dimensions = array<i32: 1>} : vector<8x8xi32>
    %6 = arith.cmpi sgt, %5, %4 : vector<8x8xi32>
    %7 = vector.extract_strided_slice %3 {offsets = [0, 0], sizes = [8, 16], strides = [1, 1]} : vector<8x192xf32> to vector<8x16xf32>
    %cst_4 = arith.constant 2.500000e-01 : f32
    %8 = vector.broadcast %cst_4 : f32 to vector<8x16xf32>
    %9 = arith.mulf %7, %8 : vector<8x16xf32>
    %10 = vector.extract_strided_slice %3 {offsets = [0, 64], sizes = [8, 16], strides = [1, 1]} : vector<8x192xf32> to vector<8x16xf32>
    %11 = vector.extract_strided_slice %3 {offsets = [0, 128], sizes = [8, 16], strides = [1, 1]} : vector<8x192xf32> to vector<8x16xf32>
    %cst_5 = arith.constant dense<0.000000e+00> : vector<8x8xf32>
    %12 = tpu.matmul %9, %10, %cst_5 {dimension_numbers = #tpu.dot_dimension_numbers<[1], [1], [0], [0], [0, 0, 1, 0], [], []>} : vector<8x16xf32>, vector<8x16xf32>, vector<8x8xf32> -> vector<8x8xf32>
    %cst_6 = arith.constant -1.000000e+30 : f32
    %13 = vector.broadcast %cst_6 : f32 to vector<8x8xf32>
    %14 = arith.select %6, %13, %12 : vector<8x8xi1>, vector<8x8xf32>
    %cst_7 = arith.constant dense<0xFF800000> : vector<8xf32>
    %15 = vector.multi_reduction <maximumf>, %14, %cst_7 [1] : vector<8x8xf32> to vector<8xf32>
    %16 = vector.shape_cast %15 : vector<8xf32> to vector<8x1xf32>
    %17 = vector.broadcast %16 : vector<8x1xf32> to vector<8x8xf32>
    %18 = arith.subf %14, %17 : vector<8x8xf32>
    %19 = math.exp %18 : vector<8x8xf32>
    %cst_8 = arith.constant dense<0.000000e+00> : vector<8xf32>
    %20 = vector.multi_reduction <add>, %19, %cst_8 [1] : vector<8x8xf32> to vector<8xf32>
    %21 = vector.shape_cast %20 : vector<8xf32> to vector<8x1xf32>
    %22 = tpu.reciprocal %21 {approx = true} : vector<8x1xf32> -> vector<8x1xf32>
    %23 = vector.broadcast %22 : vector<8x1xf32> to vector<8x8xf32>
    %24 = arith.mulf %19, %23 : vector<8x8xf32>
    %cst_9 = arith.constant dense<0.000000e+00> : vector<8x16xf32>
    %25 = tpu.matmul %24, %11, %cst_9 {dimension_numbers = #tpu.dot_dimension_numbers<[1], [0], [0], [1], [0, 0, 1, 1], [], []>} : vector<8x8xf32>, vector<8x16xf32>, vector<8x16xf32> -> vector<8x16xf32>
    %26 = vector.extract_strided_slice %3 {offsets = [0, 16], sizes = [8, 16], strides = [1, 1]} : vector<8x192xf32> to vector<8x16xf32>
    %cst_10 = arith.constant 2.500000e-01 : f32
    %27 = vector.broadcast %cst_10 : f32 to vector<8x16xf32>
    %28 = arith.mulf %26, %27 : vector<8x16xf32>
    %29 = vector.extract_strided_slice %3 {offsets = [0, 80], sizes = [8, 16], strides = [1, 1]} : vector<8x192xf32> to vector<8x16xf32>
    %30 = vector.extract_strided_slice %3 {offsets = [0, 144], sizes = [8, 16], strides = [1, 1]} : vector<8x192xf32> to vector<8x16xf32>
    %cst_11 = arith.constant dense<0.000000e+00> : vector<8x8xf32>
    %31 = tpu.matmul %28, %29, %cst_11 {dimension_numbers = #tpu.dot_dimension_numbers<[1], [1], [0], [0], [0, 0, 1, 0], [], []>} : vector<8x16xf32>, vector<8x16xf32>, vector<8x8xf32> -> vector<8x8xf32>
    %cst_12 = arith.constant -1.000000e+30 : f32
    %32 = vector.broadcast %cst_12 : f32 to vector<8x8xf32>
    %33 = arith.select %6, %32, %31 : vector<8x8xi1>, vector<8x8xf32>
    %cst_13 = arith.constant dense<0xFF800000> : vector<8xf32>
    %34 = vector.multi_reduction <maximumf>, %33, %cst_13 [1] : vector<8x8xf32> to vector<8xf32>
    %35 = vector.shape_cast %34 : vector<8xf32> to vector<8x1xf32>
    %36 = vector.broadcast %35 : vector<8x1xf32> to vector<8x8xf32>
    %37 = arith.subf %33, %36 : vector<8x8xf32>
    %38 = math.exp %37 : vector<8x8xf32>
    %cst_14 = arith.constant dense<0.000000e+00> : vector<8xf32>
    %39 = vector.multi_reduction <add>, %38, %cst_14 [1] : vector<8x8xf32> to vector<8xf32>
    %40 = vector.shape_cast %39 : vector<8xf32> to vector<8x1xf32>
    %41 = tpu.reciprocal %40 {approx = true} : vector<8x1xf32> -> vector<8x1xf32>
    %42 = vector.broadcast %41 : vector<8x1xf32> to vector<8x8xf32>
    %43 = arith.mulf %38, %42 : vector<8x8xf32>
    %cst_15 = arith.constant dense<0.000000e+00> : vector<8x16xf32>
    %44 = tpu.matmul %43, %30, %cst_15 {dimension_numbers = #tpu.dot_dimension_numbers<[1], [0], [0], [1], [0, 0, 1, 1], [], []>} : vector<8x8xf32>, vector<8x16xf32>, vector<8x16xf32> -> vector<8x16xf32>
    %45 = vector.extract_strided_slice %3 {offsets = [0, 32], sizes = [8, 16], strides = [1, 1]} : vector<8x192xf32> to vector<8x16xf32>
    %cst_16 = arith.constant 2.500000e-01 : f32
    %46 = vector.broadcast %cst_16 : f32 to vector<8x16xf32>
    %47 = arith.mulf %45, %46 : vector<8x16xf32>
    %48 = vector.extract_strided_slice %3 {offsets = [0, 96], sizes = [8, 16], strides = [1, 1]} : vector<8x192xf32> to vector<8x16xf32>
    %49 = vector.extract_strided_slice %3 {offsets = [0, 160], sizes = [8, 16], strides = [1, 1]} : vector<8x192xf32> to vector<8x16xf32>
    %cst_17 = arith.constant dense<0.000000e+00> : vector<8x8xf32>
    %50 = tpu.matmul %47, %48, %cst_17 {dimension_numbers = #tpu.dot_dimension_numbers<[1], [1], [0], [0], [0, 0, 1, 0], [], []>} : vector<8x16xf32>, vector<8x16xf32>, vector<8x8xf32> -> vector<8x8xf32>
    %cst_18 = arith.constant -1.000000e+30 : f32
    %51 = vector.broadcast %cst_18 : f32 to vector<8x8xf32>
    %52 = arith.select %6, %51, %50 : vector<8x8xi1>, vector<8x8xf32>
    %cst_19 = arith.constant dense<0xFF800000> : vector<8xf32>
    %53 = vector.multi_reduction <maximumf>, %52, %cst_19 [1] : vector<8x8xf32> to vector<8xf32>
    %54 = vector.shape_cast %53 : vector<8xf32> to vector<8x1xf32>
    %55 = vector.broadcast %54 : vector<8x1xf32> to vector<8x8xf32>
    %56 = arith.subf %52, %55 : vector<8x8xf32>
    %57 = math.exp %56 : vector<8x8xf32>
    %cst_20 = arith.constant dense<0.000000e+00> : vector<8xf32>
    %58 = vector.multi_reduction <add>, %57, %cst_20 [1] : vector<8x8xf32> to vector<8xf32>
    %59 = vector.shape_cast %58 : vector<8xf32> to vector<8x1xf32>
    %60 = tpu.reciprocal %59 {approx = true} : vector<8x1xf32> -> vector<8x1xf32>
    %61 = vector.broadcast %60 : vector<8x1xf32> to vector<8x8xf32>
    %62 = arith.mulf %57, %61 : vector<8x8xf32>
    %cst_21 = arith.constant dense<0.000000e+00> : vector<8x16xf32>
    %63 = tpu.matmul %62, %49, %cst_21 {dimension_numbers = #tpu.dot_dimension_numbers<[1], [0], [0], [1], [0, 0, 1, 1], [], []>} : vector<8x8xf32>, vector<8x16xf32>, vector<8x16xf32> -> vector<8x16xf32>
    %64 = vector.extract_strided_slice %3 {offsets = [0, 48], sizes = [8, 16], strides = [1, 1]} : vector<8x192xf32> to vector<8x16xf32>
    %cst_22 = arith.constant 2.500000e-01 : f32
    %65 = vector.broadcast %cst_22 : f32 to vector<8x16xf32>
    %66 = arith.mulf %64, %65 : vector<8x16xf32>
    %67 = vector.extract_strided_slice %3 {offsets = [0, 112], sizes = [8, 16], strides = [1, 1]} : vector<8x192xf32> to vector<8x16xf32>
    %68 = vector.extract_strided_slice %3 {offsets = [0, 176], sizes = [8, 16], strides = [1, 1]} : vector<8x192xf32> to vector<8x16xf32>
    %cst_23 = arith.constant dense<0.000000e+00> : vector<8x8xf32>
    %69 = tpu.matmul %66, %67, %cst_23 {dimension_numbers = #tpu.dot_dimension_numbers<[1], [1], [0], [0], [0, 0, 1, 0], [], []>} : vector<8x16xf32>, vector<8x16xf32>, vector<8x8xf32> -> vector<8x8xf32>
    %cst_24 = arith.constant -1.000000e+30 : f32
    %70 = vector.broadcast %cst_24 : f32 to vector<8x8xf32>
    %71 = arith.select %6, %70, %69 : vector<8x8xi1>, vector<8x8xf32>
    %cst_25 = arith.constant dense<0xFF800000> : vector<8xf32>
    %72 = vector.multi_reduction <maximumf>, %71, %cst_25 [1] : vector<8x8xf32> to vector<8xf32>
    %73 = vector.shape_cast %72 : vector<8xf32> to vector<8x1xf32>
    %74 = vector.broadcast %73 : vector<8x1xf32> to vector<8x8xf32>
    %75 = arith.subf %71, %74 : vector<8x8xf32>
    %76 = math.exp %75 : vector<8x8xf32>
    %cst_26 = arith.constant dense<0.000000e+00> : vector<8xf32>
    %77 = vector.multi_reduction <add>, %76, %cst_26 [1] : vector<8x8xf32> to vector<8xf32>
    %78 = vector.shape_cast %77 : vector<8xf32> to vector<8x1xf32>
    %79 = tpu.reciprocal %78 {approx = true} : vector<8x1xf32> -> vector<8x1xf32>
    %80 = vector.broadcast %79 : vector<8x1xf32> to vector<8x8xf32>
    %81 = arith.mulf %76, %80 : vector<8x8xf32>
    %cst_27 = arith.constant dense<0.000000e+00> : vector<8x16xf32>
    %82 = tpu.matmul %81, %68, %cst_27 {dimension_numbers = #tpu.dot_dimension_numbers<[1], [0], [0], [1], [0, 0, 1, 1], [], []>} : vector<8x8xf32>, vector<8x16xf32>, vector<8x16xf32> -> vector<8x16xf32>
    %83 = tpu.concatenate %25, %44, %63, %82 in 1 : vector<8x16xf32>, vector<8x16xf32>, vector<8x16xf32>, vector<8x16xf32> -> vector<8x64xf32>
    %c0_28 = arith.constant 0 : index
    %c0_29 = arith.constant 0 : index
    %84 = vector.load %arg3[%c0_28, %c0_29] : memref<64x32xf32, #tpu.memory_space<vmem>>, vector<64x32xf32>
    %cst_30 = arith.constant dense<0.000000e+00> : vector<8x32xf32>
    %85 = tpu.matmul %83, %84, %cst_30 {dimension_numbers = #tpu.dot_dimension_numbers<[1], [0], [0], [1], [0, 0, 1, 1], [], []>} : vector<8x64xf32>, vector<64x32xf32>, vector<8x32xf32> -> vector<8x32xf32>
    %86 = arith.addf %85, %1 : vector<8x32xf32>
    %c0_31 = arith.constant 0 : index
    %c0_32 = arith.constant 0 : index
    %c0_33 = arith.constant 0 : index
    %87 = vector.load %arg4[%c0_31, %c0_32, %c0_33] : memref<1x8x32xf32, #tpu.memory_space<vmem>>, vector<1x8x32xf32>
    %88 = vector.shape_cast %87 : vector<1x8x32xf32> to vector<8x32xf32>
    %89 = vector.shape_cast %86 : vector<8x32xf32> to vector<1x8x32xf32>
    tpu.vector_store %arg4[%c0_31, %c0_32, %c0_33], %89 {strides = array<i32>} : memref<1x8x32xf32, #tpu.memory_space<vmem>>, vector<1x8x32xf32>,
    return
  }
  func.func @transform_0(%arg0: i32) -> (i32, i32, i32) {
    %c0_i32 = arith.constant 0 : i32
    %c0_i32_0 = arith.constant 0 : i32
    %c0_i32_1 = arith.constant 0 : i32
    return %arg0, %c0_i32, %c0_i32_0 : i32, i32, i32
  }
  func.func @transform_1(%arg0: i32) -> (i32, i32) {
    %c0_i32 = arith.constant 0 : i32
    %c0_i32_0 = arith.constant 0 : i32
    %c0_i32_1 = arith.constant 0 : i32
    return %c0_i32, %c0_i32_0 : i32, i32
  }
  func.func @transform_2(%arg0: i32) -> (i32, i32) {
    %c0_i32 = arith.constant 0 : i32
    %c0_i32_0 = arith.constant 0 : i32
    %c0_i32_1 = arith.constant 0 : i32
    return %c0_i32, %c0_i32_0 : i32, i32
  }
  func.func @transform_3(%arg0: i32) -> (i32, i32, i32) {
    %c0_i32 = arith.constant 0 : i32
    %c0_i32_0 = arith.constant 0 : i32
    %c0_i32_1 = arith.constant 0 : i32
    return %arg0, %c0_i32, %c0_i32_0 : i32, i32, i32
  }
}

module attributes {stable_mosaic.version = 11 : i64} {
  func.func @ffn_block_kernel(%arg0: i32, %arg1: memref<1x8x32xf32, #tpu.memory_space<vmem>>, %arg2: memref<1x32xf32, #tpu.memory_space<vmem>>, %arg3: memref<1x32xf32, #tpu.memory_space<vmem>>, %arg4: memref<32x128xf32, #tpu.memory_space<vmem>>, %arg5: memref<1x128xf32, #tpu.memory_space<vmem>>, %arg6: memref<128x32xf32, #tpu.memory_space<vmem>>, %arg7: memref<1x32xf32, #tpu.memory_space<vmem>>, %arg8: memref<1x8x32xf32, #tpu.memory_space<vmem>>) attributes {dimension_semantics = [#tpu.dimension_semantics<parallel>], iteration_bounds = array<i64: 2>, scalar_prefetch = 0 : i64, scratch_operands = 0 : i64, tpu.core_type = #tpu.core_type<tc>, window_params = [{transform_indices = @transform_0, window_bounds = array<i64: 1, 8, 32>}, {pipeline_mode = #tpu.pipeline_mode<synchronous>, transform_indices = @transform_1, window_bounds = array<i64: 1, 32>}, {pipeline_mode = #tpu.pipeline_mode<synchronous>, transform_indices = @transform_2, window_bounds = array<i64: 1, 32>}, {pipeline_mode = #tpu.pipeline_mode<synchronous>, transform_indices = @transform_3, window_bounds = array<i64: 32, 128>}, {pipeline_mode = #tpu.pipeline_mode<synchronous>, transform_indices = @transform_4, window_bounds = array<i64: 1, 128>}, {pipeline_mode = #tpu.pipeline_mode<synchronous>, transform_indices = @transform_5, window_bounds = array<i64: 128, 32>}, {pipeline_mode = #tpu.pipeline_mode<synchronous>, transform_indices = @transform_6, window_bounds = array<i64: 1, 32>}, {transform_indices = @transform_7, window_bounds = array<i64: 1, 8, 32>}]} {
    %c0 = arith.constant 0 : index
    %c0_0 = arith.constant 0 : index
    %c0_1 = arith.constant 0 : index
    %0 = vector.load %arg1[%c0, %c0_0, %c0_1] : memref<1x8x32xf32, #tpu.memory_space<vmem>>, vector<1x8x32xf32>
    %1 = vector.shape_cast %0 : vector<1x8x32xf32> to vector<8x32xf32>
    %c0_2 = arith.constant 0 : index
    %c0_3 = arith.constant 0 : index
    %2 = vector.load %arg2[%c0_2, %c0_3] : memref<1x32xf32, #tpu.memory_space<vmem>>, vector<1x32xf32>
    %c0_4 = arith.constant 0 : index
    %c0_5 = arith.constant 0 : index
    %3 = vector.load %arg3[%c0_4, %c0_5] : memref<1x32xf32, #tpu.memory_space<vmem>>, vector<1x32xf32>
    %cst = arith.constant dense<0.000000e+00> : vector<8xf32>
    %4 = vector.multi_reduction <add>, %1, %cst [1] : vector<8x32xf32> to vector<8xf32>
    %5 = vector.shape_cast %4 : vector<8xf32> to vector<8x1xf32>
    %cst_6 = arith.constant 3.200000e+01 : f32
    %6 = vector.broadcast %cst_6 : f32 to vector<8x1xf32>
    %7 = arith.divf %5, %6 : vector<8x1xf32>
    %8 = vector.broadcast %7 : vector<8x1xf32> to vector<8x32xf32>
    %9 = arith.subf %1, %8 : vector<8x32xf32>
    %10 = arith.mulf %9, %9 : vector<8x32xf32>
    %cst_7 = arith.constant dense<0.000000e+00> : vector<8xf32>
    %11 = vector.multi_reduction <add>, %10, %cst_7 [1] : vector<8x32xf32> to vector<8xf32>
    %12 = vector.shape_cast %11 : vector<8xf32> to vector<8x1xf32>
    %cst_8 = arith.constant 3.200000e+01 : f32
    %13 = vector.broadcast %cst_8 : f32 to vector<8x1xf32>
    %14 = arith.divf %12, %13 : vector<8x1xf32>
    %15 = vector.broadcast %7 : vector<8x1xf32> to vector<8x32xf32>
    %16 = arith.subf %1, %15 : vector<8x32xf32>
    %cst_9 = arith.constant 9.99999974E-6 : f32
    %17 = vector.broadcast %cst_9 : f32 to vector<8x1xf32>
    %18 = arith.addf %14, %17 : vector<8x1xf32>
    %19 = math.rsqrt %18 : vector<8x1xf32>
    %20 = vector.broadcast %19 : vector<8x1xf32> to vector<8x32xf32>
    %21 = arith.mulf %16, %20 : vector<8x32xf32>
    %22 = vector.broadcast %2 : vector<1x32xf32> to vector<8x32xf32>
    %23 = arith.mulf %21, %22 : vector<8x32xf32>
    %24 = vector.broadcast %3 : vector<1x32xf32> to vector<8x32xf32>
    %25 = arith.addf %23, %24 : vector<8x32xf32>
    %c0_10 = arith.constant 0 : index
    %c0_11 = arith.constant 0 : index
    %26 = vector.load %arg4[%c0_10, %c0_11] : memref<32x128xf32, #tpu.memory_space<vmem>>, vector<32x128xf32>
    %cst_12 = arith.constant dense<0.000000e+00> : vector<8x128xf32>
    %27 = tpu.matmul %25, %26, %cst_12 {dimension_numbers = #tpu.dot_dimension_numbers<[1], [0], [0], [1], [0, 0, 1, 1], [], []>} : vector<8x32xf32>, vector<32x128xf32>, vector<8x128xf32> -> vector<8x128xf32>
    %c0_13 = arith.constant 0 : index
    %c0_14 = arith.constant 0 : index
    %28 = vector.load %arg5[%c0_13, %c0_14] : memref<1x128xf32, #tpu.memory_space<vmem>>, vector<1x128xf32>
    %29 = vector.broadcast %28 : vector<1x128xf32> to vector<8x128xf32>
    %30 = arith.addf %27, %29 : vector<8x128xf32>
    %cst_15 = arith.constant 5.000000e-01 : f32
    %31 = vector.broadcast %cst_15 : f32 to vector<8x128xf32>
    %32 = arith.mulf %31, %30 : vector<8x128xf32>
    %cst_16 = arith.constant 0.707106769 : f32
    %33 = vector.broadcast %cst_16 : f32 to vector<8x128xf32>
    %34 = arith.mulf %30, %33 : vector<8x128xf32>
    %35 = math.erf %34 : vector<8x128xf32>
    %cst_17 = arith.constant 1.000000e+00 : f32
    %36 = vector.broadcast %cst_17 : f32 to vector<8x128xf32>
    %37 = arith.addf %36, %35 : vector<8x128xf32>
    %38 = arith.mulf %32, %37 : vector<8x128xf32>
    %c0_18 = arith.constant 0 : index
    %c0_19 = arith.constant 0 : index
    %39 = vector.load %arg6[%c0_18, %c0_19] : memref<128x32xf32, #tpu.memory_space<vmem>>, vector<128x32xf32>
    %cst_20 = arith.constant dense<0.000000e+00> : vector<8x32xf32>
    %40 = tpu.matmul %38, %39, %cst_20 {dimension_numbers = #tpu.dot_dimension_numbers<[1], [0], [0], [1], [0, 0, 1, 1], [], []>} : vector<8x128xf32>, vector<128x32xf32>, vector<8x32xf32> -> vector<8x32xf32>
    %c0_21 = arith.constant 0 : index
    %c0_22 = arith.constant 0 : index
    %41 = vector.load %arg7[%c0_21, %c0_22] : memref<1x32xf32, #tpu.memory_space<vmem>>, vector<1x32xf32>
    %42 = vector.broadcast %41 : vector<1x32xf32> to vector<8x32xf32>
    %43 = arith.addf %40, %42 : vector<8x32xf32>
    %44 = arith.addf %43, %1 : vector<8x32xf32>
    %c0_23 = arith.constant 0 : index
    %c0_24 = arith.constant 0 : index
    %c0_25 = arith.constant 0 : index
    %45 = vector.load %arg8[%c0_23, %c0_24, %c0_25] : memref<1x8x32xf32, #tpu.memory_space<vmem>>, vector<1x8x32xf32>
    %46 = vector.shape_cast %45 : vector<1x8x32xf32> to vector<8x32xf32>
    %47 = vector.shape_cast %44 : vector<8x32xf32> to vector<1x8x32xf32>
    tpu.vector_store %arg8[%c0_23, %c0_24, %c0_25], %47 {strides = array<i32>} : memref<1x8x32xf32, #tpu.memory_space<vmem>>, vector<1x8x32xf32>,
    return
  }
  func.func @transform_0(%arg0: i32) -> (i32, i32, i32) {
    %c0_i32 = arith.constant 0 : i32
    %c0_i32_0 = arith.constant 0 : i32
    %c0_i32_1 = arith.constant 0 : i32
    return %arg0, %c0_i32, %c0_i32_0 : i32, i32, i32
  }
  func.func @transform_1(%arg0: i32) -> (i32, i32) {
    %c0_i32 = arith.constant 0 : i32
    %c0_i32_0 = arith.constant 0 : i32
    %c0_i32_1 = arith.constant 0 : i32
    return %c0_i32, %c0_i32_0 : i32, i32
  }
  func.func @transform_2(%arg0: i32) -> (i32, i32) {
    %c0_i32 = arith.constant 0 : i32
    %c0_i32_0 = arith.constant 0 : i32
    %c0_i32_1 = arith.constant 0 : i32
    return %c0_i32, %c0_i32_0 : i32, i32
  }
  func.func @transform_3(%arg0: i32) -> (i32, i32) {
    %c0_i32 = arith.constant 0 : i32
    %c0_i32_0 = arith.constant 0 : i32
    %c0_i32_1 = arith.constant 0 : i32
    return %c0_i32, %c0_i32_0 : i32, i32
  }
  func.func @transform_4(%arg0: i32) -> (i32, i32) {
    %c0_i32 = arith.constant 0 : i32
    %c0_i32_0 = arith.constant 0 : i32
    %c0_i32_1 = arith.constant 0 : i32
    return %c0_i32, %c0_i32_0 : i32, i32
  }
  func.func @transform_5(%arg0: i32) -> (i32, i32) {
    %c0_i32 = arith.constant 0 : i32
    %c0_i32_0 = arith.constant 0 : i32
    %c0_i32_1 = arith.constant 0 : i32
    return %c0_i32, %c0_i32_0 : i32, i32
  }
  func.func @transform_6(%arg0: i32) -> (i32, i32) {
    %c0_i32 = arith.constant 0 : i32
    %c0_i32_0 = arith.constant 0 : i32
    %c0_i32_1 = arith.constant 0 : i32
    return %c0_i32, %c0_i32_0 : i32, i32
  }
  func.func @transform_7(%arg0: i32) -> (i32, i32, i32) {
    %c0_i32 = arith.constant 0 : i32
    %c0_i32_0 = arith.constant 0 : i32
    %c0_i32_1 = arith.constant 0 : i32
    return %arg0, %c0_i32, %c0_i32_0 : i32, i32, i32
  }
}

module attributes {stable_mosaic.version = 11 : i64} {
  func.func @lm_loss_kernel(%arg0: i32, %arg1: memref<1x8x32xf32, #tpu.memory_space<vmem>>, %arg2: memref<1x8x1xi32, #tpu.memory_space<vmem>>, %arg3: memref<1x32xf32, #tpu.memory_space<vmem>>, %arg4: memref<1x32xf32, #tpu.memory_space<vmem>>, %arg5: memref<32x256xf32, #tpu.memory_space<vmem>>, %arg6: memref<1x256xf32, #tpu.memory_space<vmem>>, %arg7: memref<1x8x1xf32, #tpu.memory_space<vmem>>) attributes {dimension_semantics = [#tpu.dimension_semantics<parallel>], iteration_bounds = array<i64: 2>, scalar_prefetch = 0 : i64, scratch_operands = 0 : i64, tpu.core_type = #tpu.core_type<tc>, window_params = [{transform_indices = @transform_0, window_bounds = array<i64: 1, 8, 32>}, {transform_indices = @transform_1, window_bounds = array<i64: 1, 8, 1>}, {pipeline_mode = #tpu.pipeline_mode<synchronous>, transform_indices = @transform_2, window_bounds = array<i64: 1, 32>}, {pipeline_mode = #tpu.pipeline_mode<synchronous>, transform_indices = @transform_3, window_bounds = array<i64: 1, 32>}, {pipeline_mode = #tpu.pipeline_mode<synchronous>, transform_indices = @transform_4, window_bounds = array<i64: 32, 256>}, {pipeline_mode = #tpu.pipeline_mode<synchronous>, transform_indices = @transform_5, window_bounds = array<i64: 1, 256>}, {transform_indices = @transform_6, window_bounds = array<i64: 1, 8, 1>}]} {
    %c0 = arith.constant 0 : index
    %c0_0 = arith.constant 0 : index
    %c0_1 = arith.constant 0 : index
    %0 = vector.load %arg1[%c0, %c0_0, %c0_1] : memref<1x8x32xf32, #tpu.memory_space<vmem>>, vector<1x8x32xf32>
    %1 = vector.shape_cast %0 : vector<1x8x32xf32> to vector<8x32xf32>
    %c0_2 = arith.constant 0 : index
    %c0_3 = arith.constant 0 : index
    %2 = vector.load %arg3[%c0_2, %c0_3] : memref<1x32xf32, #tpu.memory_space<vmem>>, vector<1x32xf32>
    %c0_4 = arith.constant 0 : index
    %c0_5 = arith.constant 0 : index
    %3 = vector.load %arg4[%c0_4, %c0_5] : memref<1x32xf32, #tpu.memory_space<vmem>>, vector<1x32xf32>
    %cst = arith.constant dense<0.000000e+00> : vector<8xf32>
    %4 = vector.multi_reduction <add>, %1, %cst [1] : vector<8x32xf32> to vector<8xf32>
    %5 = vector.shape_cast %4 : vector<8xf32> to vector<8x1xf32>
    %cst_6 = arith.constant 3.200000e+01 : f32
    %6 = vector.broadcast %cst_6 : f32 to vector<8x1xf32>
    %7 = arith.divf %5, %6 : vector<8x1xf32>
    %8 = vector.broadcast %7 : vector<8x1xf32> to vector<8x32xf32>
    %9 = arith.subf %1, %8 : vector<8x32xf32>
    %10 = arith.mulf %9, %9 : vector<8x32xf32>
    %cst_7 = arith.constant dense<0.000000e+00> : vector<8xf32>
    %11 = vector.multi_reduction <add>, %10, %cst_7 [1] : vector<8x32xf32> to vector<8xf32>
    %12 = vector.shape_cast %11 : vector<8xf32> to vector<8x1xf32>
    %cst_8 = arith.constant 3.200000e+01 : f32
    %13 = vector.broadcast %cst_8 : f32 to vector<8x1xf32>
    %14 = arith.divf %12, %13 : vector<8x1xf32>
    %15 = vector.broadcast %7 : vector<8x1xf32> to vector<8x32xf32>
    %16 = arith.subf %1, %15 : vector<8x32xf32>
    %cst_9 = arith.constant 9.99999974E-6 : f32
    %17 = vector.broadcast %cst_9 : f32 to vector<8x1xf32>
    %18 = arith.addf %14, %17 : vector<8x1xf32>
    %19 = math.rsqrt %18 : vector<8x1xf32>
    %20 = vector.broadcast %19 : vector<8x1xf32> to vector<8x32xf32>
    %21 = arith.mulf %16, %20 : vector<8x32xf32>
    %22 = vector.broadcast %2 : vector<1x32xf32> to vector<8x32xf32>
    %23 = arith.mulf %21, %22 : vector<8x32xf32>
    %24 = vector.broadcast %3 : vector<1x32xf32> to vector<8x32xf32>
    %25 = arith.addf %23, %24 : vector<8x32xf32>
    %c0_10 = arith.constant 0 : index
    %c0_11 = arith.constant 0 : index
    %26 = vector.load %arg5[%c0_10, %c0_11] : memref<32x256xf32, #tpu.memory_space<vmem>>, vector<32x256xf32>
    %cst_12 = arith.constant dense<0.000000e+00> : vector<8x256xf32>
    %27 = tpu.matmul %25, %26, %cst_12 {dimension_numbers = #tpu.dot_dimension_numbers<[1], [0], [0], [1], [0, 0, 1, 1], [], []>} : vector<8x32xf32>, vector<32x256xf32>, vector<8x256xf32> -> vector<8x256xf32>
    %c0_13 = arith.constant 0 : index
    %c0_14 = arith.constant 0 : index
    %28 = vector.load %arg6[%c0_13, %c0_14] : memref<1x256xf32, #tpu.memory_space<vmem>>, vector<1x256xf32>
    %29 = vector.broadcast %28 : vector<1x256xf32> to vector<8x256xf32>
    %30 = arith.addf %27, %29 : vector<8x256xf32>
    %cst_15 = arith.constant dense<0xFF800000> : vector<8xf32>
    %31 = vector.multi_reduction <maximumf>, %30, %cst_15 [1] : vector<8x256xf32> to vector<8xf32>
    %32 = vector.shape_cast %31 : vector<8xf32> to vector<8x1xf32>
    %33 = vector.broadcast %32 : vector<8x1xf32> to vector<8x256xf32>
    %34 = arith.subf %30, %33 : vector<8x256xf32>
    %35 = math.exp %34 : vector<8x256xf32>
    %cst_16 = arith.constant dense<0.000000e+00> : vector<8xf32>
    %36 = vector.multi_reduction <add>, %35, %cst_16 [1] : vector<8x256xf32> to vector<8xf32>
    %37 = vector.shape_cast %36 : vector<8xf32> to vector<8x1xf32>
    %38 = math.log %37 : vector<8x1xf32>
    %39 = arith.addf %38, %32 : vector<8x1xf32>
    %c0_17 = arith.constant 0 : index
    %c0_18 = arith.constant 0 : index
    %c0_19 = arith.constant 0 : index
    %40 = vector.load %arg2[%c0_17, %c0_18, %c0_19] : memref<1x8x1xi32, #tpu.memory_space<vmem>>, vector<1x8x1xi32>
    %41 = vector.shape_cast %40 : vector<1x8x1xi32> to vector<8x1xi32>
    %42 = tpu.iota {dimensions = array<i32: 1>} : vector<8x256xi32>
    %43 = vector.broadcast %41 : vector<8x1xi32> to vector<8x256xi32>
    %44 = arith.cmpi eq, %42, %43 : vector<8x256xi32>
    %cst_20 = arith.constant 0.000000e+00 : f32
    %45 = vector.broadcast %cst_20 : f32 to vector<8x256xf32>
    %46 = arith.select %44, %30, %45 : vector<8x256xi1>, vector<8x256xf32>
    %cst_21 = arith.constant dense<0.000000e+00> : vector<8xf32>
    %47 = vector.multi_reduction <add>, %46, %cst_21 [1] : vector<8x256xf32> to vector<8xf32>
    %48 = vector.shape_cast %47 : vector<8xf32> to vector<8x1xf32>
    %49 = arith.subf %39, %48 : vector<8x1xf32>
    %c0_22 = arith.constant 0 : index
    %c0_23 = arith.constant 0 : index
    %c0_24 = arith.constant 0 : index
    %50 = vector.load %arg7[%c0_22, %c0_23, %c0_24] : memref<1x8x1xf32, #tpu.memory_space<vmem>>, vector<1x8x1xf32>
    %51 = vector.shape_cast %50 : vector<1x8x1xf32> to vector<8x1xf32>
    %52 = vector.shape_cast %49 : vector<8x1xf32> to vector<1x8x1xf32>
    tpu.vector_store %arg7[%c0_22, %c0_23, %c0_24], %52 {strides = array<i32>} : memref<1x8x1xf32, #tpu.memory_space<vmem>>, vector<1x8x1xf32>,
    return
  }
  func.func @transform_0(%arg0: i32) -> (i32, i32, i32) {
    %c0_i32 = arith.constant 0 : i32
    %c0_i32_0 = arith.constant 0 : i32
    %c0_i32_1 = arith.constant 0 : i32
    return %arg0, %c0_i32, %c0_i32_0 : i32, i32, i32
  }
  func.func @transform_1(%arg0: i32) -> (i32, i32, i32) {
    %c0_i32 = arith.constant 0 : i32
    %c0_i32_0 = arith.constant 0 : i32
    %c0_i32_1 = arith.constant 0 : i32
    return %arg0, %c0_i32, %c0_i32_0 : i32, i32, i32
  }
  func.func @transform_2(%arg0: i32) -> (i32, i32) {
    %c0_i32 = arith.constant 0 : i32
    %c0_i32_0 = arith.constant 0 : i32
    %c0_i32_1 = arith.constant 0 : i32
    return %c0_i32, %c0_i32_0 : i32, i32
  }
  func.func @transform_3(%arg0: i32) -> (i32, i32) {
    %c0_i32 = arith.constant 0 : i32
    %c0_i32_0 = arith.constant 0 : i32
    %c0_i32_1 = arith.constant 0 : i32
    return %c0_i32, %c0_i32_0 : i32, i32
  }
  func.func @transform_4(%arg0: i32) -> (i32, i32) {
    %c0_i32 = arith.constant 0 : i32
    %c0_i32_0 = arith.constant 0 : i32
    %c0_i32_1 = arith.constant 0 : i32
    return %c0_i32, %c0_i32_0 : i32, i32
  }
  func.func @transform_5(%arg0: i32) -> (i32, i32) {
    %c0_i32 = arith.constant 0 : i32
    %c0_i32_0 = arith.constant 0 : i32
    %c0_i32_1 = arith.constant 0 : i32
    return %c0_i32, %c0_i32_0 : i32, i32
  }
  func.func @transform_6(%arg0: i32) -> (i32, i32, i32) {
    %c0_i32 = arith.constant 0 : i32
    %c0_i32_0 = arith.constant 0 : i32
    %c0_i32_1 = arith.constant 0 : i32
    return %arg0, %c0_i32, %c0_i32_0 : i32, i32, i32
  }
}

</mosaic_0001>

<llo_original>
// kernel: transformer_forward.9
$region0: #{transformer_forward.9}
  #allocation0 [shape = 'u32[]', space=smem, size = 0x4, offset = 0x4, fixed_abs, tag = 'smem constant byte address 0x4 - core index']
  #allocation1 [shape = 'u32[72,128]{1,0:T(1,128)}', space=vmem, size = 0x9000, scoped, tag = 'internal scratch']
  %s0 = inlined_call_operand.vmem [shape: f32[2,8,32], index: 0, kind: input, shape index: {}]
  %s1 = inlined_call_operand.vmem [shape: s32[2,8,1], index: 1, kind: input, shape index: {}]
  %s2 = inlined_call_operand.vmem [shape: f32[1,32], index: 2, kind: input, shape index: {}]
  %s3 = inlined_call_operand.vmem [shape: f32[1,32], index: 3, kind: input, shape index: {}]
  %s4 = inlined_call_operand.vmem [shape: f32[32,256], index: 4, kind: input, shape index: {}]
  %s5 = inlined_call_operand.vmem [shape: f32[1,256], index: 5, kind: input, shape index: {}]
  %s6 = inlined_call_operand.vmem [shape: f32[2,8,1], index: 6, kind: output, shape index: {}]
  %s7 = sld [smem:[#allocation0]]
  $region57: #{transformer_forward.9} parent=0
    _
  %s9 = ssub.s32 1, %s7
  %s10 = scalar_select 0, %s9, %s7
  loop: start=0, step=1, limit=4
  $region2: #{transformer_forward.9} parent=0 // loop_pre_header
    _
  $region3: #{transformer_forward.9} parent=0 // loop_header
    %s12 = sphi 0, %s16
    %p13 = scmp.ge.s32.totalorder %s12, 4
    %s22 = sphi 0, %s24
    %s25 = sphi 0, %s22
    %s26 = sphi 0, %s25
    %s42 = sphi 0, %s26
    %s48 = sphi 0, %s50
    %s51 = sphi 0, %s48
    %s52 = sphi 0, %s51
    %s68 = sphi 0, %s52
    %s72 = sphi 0, %s72
    %s74 = sphi 0, %s72
    %s75 = sphi 0, %s74
    %s89 = sphi 0, %s75
    %s93 = sphi 0, %s93
    %s95 = sphi 0, %s93
    %s96 = sphi 0, %s95
    %s110 = sphi 0, %s96
    %s114 = sphi 0, %s114
    %s116 = sphi 0, %s114
    %s117 = sphi 0, %s116
    %s131 = sphi 0, %s117
    %s135 = sphi 0, %s135
    %s137 = sphi 0, %s135
    %s138 = sphi 0, %s137
    %s152 = sphi 0, %s138
    %s158 = sphi 0, %s160
    %s161 = sphi 0, %s158
    %s162 = sphi 0, %s161
    %s178 = sphi 0, %s162
  $region4: #{transformer_forward.9} parent=0 // loop_header_branch
    %15 = sbr.rel (%p13) target = $region8
  $region5: #{transformer_forward.9} parent=0 // loop_body
    %s17 = ssub.s32 %s12, 1
    %s18 = ssub.s32 %s12, 2
    %s19 = sadd.s32 %s12, 1
    %s20 = ssub.s32 %s12, %s19
    %p21 = scmp.eq.s32.totalorder %s20, 0
    %s23 = sadd.s32 %s22, 1
    %s24 = scalar_select %p21, %s22, %s23
    %p27 = pneg %p21
    %p28 = scmp.eq.s32.totalorder %s12, 1
    %p29 = por %p27, %p28
    %p30 = scmp.ne.s32.totalorder %s22, %s25
    %p31 = scmp.eq.s32.totalorder %s12, 0
    %p32 = por %p30, %p31
    %p33 = scmp.ne.s32.totalorder %s22, %s25
    %p34 = scmp.eq.s32.totalorder %s17, 1
    %p35 = por %p33, %p34
    %p36 = scmp.ne.s32.totalorder %s25, %s26
    %p37 = scmp.eq.s32.totalorder %s17, 0
    %p38 = por %p36, %p37
    %p39 = scmp.ne.s32.totalorder %s25, %s26
    %p40 = scmp.eq.s32.totalorder %s18, 1
    %p41 = por %p39, %p40
    %p43 = scmp.ne.s32.totalorder %s26, %s42
    %p44 = scmp.eq.s32.totalorder %s18, 0
    %p45 = por %p43, %p44
    %s46 = ssub.s32 %s12, %s19
    %p47 = scmp.eq.s32.totalorder %s46, 0
    %s49 = sadd.s32 %s48, 1
    %s50 = scalar_select %p47, %s48, %s49
    %p53 = pneg %p47
    %p54 = scmp.eq.s32.totalorder %s12, 1
    %p55 = por %p53, %p54
    %p56 = scmp.ne.s32.totalorder %s48, %s51
    %p57 = scmp.eq.s32.totalorder %s12, 0
    %p58 = por %p56, %p57
    %p59 = scmp.ne.s32.totalorder %s48, %s51
    %p60 = scmp.eq.s32.totalorder %s17, 1
    %p61 = por %p59, %p60
    %p62 = scmp.ne.s32.totalorder %s51, %s52
    %p63 = scmp.eq.s32.totalorder %s17, 0
    %p64 = por %p62, %p63
    %p65 = scmp.ne.s32.totalorder %s51, %s52
    %p66 = scmp.eq.s32.totalorder %s18, 1
    %p67 = por %p65, %p66
    %p69 = scmp.ne.s32.totalorder %s52, %s68
    %p70 = scmp.eq.s32.totalorder %s18, 0
    %p71 = por %p69, %p70
    %s73 = sadd.s32 %s72, 1
    %p76 = scmp.eq.s32.totalorder %s12, 1
    %p77 = scmp.ne.s32.totalorder %s72, %s74
    %p78 = scmp.eq.s32.totalorder %s12, 0
    %p79 = por %p77, %p78
    %p80 = scmp.ne.s32.totalorder %s72, %s74
    %p81 = scmp.eq.s32.totalorder %s17, 1
    %p82 = por %p80, %p81
    %p83 = scmp.ne.s32.totalorder %s74, %s75
    %p84 = scmp.eq.s32.totalorder %s17, 0
    %p85 = por %p83, %p84
    %p86 = scmp.ne.s32.totalorder %s74, %s75
    %p87 = scmp.eq.s32.totalorder %s18, 1
    %p88 = por %p86, %p87
    %p90 = scmp.ne.s32.totalorder %s75, %s89
    %p91 = scmp.eq.s32.totalorder %s18, 0
    %p92 = por %p90, %p91
    %s94 = sadd.s32 %s93, 1
    %p97 = scmp.eq.s32.totalorder %s12, 1
    %p98 = scmp.ne.s32.totalorder %s93, %s95
    %p99 = scmp.eq.s32.totalorder %s12, 0
    %p100 = por %p98, %p99
    %p101 = scmp.ne.s32.totalorder %s93, %s95
    %p102 = scmp.eq.s32.totalorder %s17, 1
    %p103 = por %p101, %p102
    %p104 = scmp.ne.s32.totalorder %s95, %s96
    %p105 = scmp.eq.s32.totalorder %s17, 0
    %p106 = por %p104, %p105
    %p107 = scmp.ne.s32.totalorder %s95, %s96
    %p108 = scmp.eq.s32.totalorder %s18, 1
    %p109 = por %p107, %p108
    %p111 = scmp.ne.s32.totalorder %s96, %s110
    %p112 = scmp.eq.s32.totalorder %s18, 0
    %p113 = por %p111, %p112
    %s115 = sadd.s32 %s114, 1
    %p118 = scmp.eq.s32.totalorder %s12, 1
    %p119 = scmp.ne.s32.totalorder %s114, %s116
    %p120 = scmp.eq.s32.totalorder %s12, 0
    %p121 = por %p119, %p120
    %p122 = scmp.ne.s32.totalorder %s114, %s116
    %p123 = scmp.eq.s32.totalorder %s17, 1
    %p124 = por %p122, %p123
    %p125 = scmp.ne.s32.totalorder %s116, %s117
    %p126 = scmp.eq.s32.totalorder %s17, 0
    %p127 = por %p125, %p126
    %p128 = scmp.ne.s32.totalorder %s116, %s117
    %p129 = scmp.eq.s32.totalorder %s18, 1
    %p130 = por %p128, %p129
    %p132 = scmp.ne.s32.totalorder %s117, %s131
    %p133 = scmp.eq.s32.totalorder %s18, 0
    %p134 = por %p132, %p133
    %s136 = sadd.s32 %s135, 1
    %p139 = scmp.eq.s32.totalorder %s12, 1
    %p140 = scmp.ne.s32.totalorder %s135, %s137
    %p141 = scmp.eq.s32.totalorder %s12, 0
    %p142 = por %p140, %p141
    %p143 = scmp.ne.s32.totalorder %s135, %s137
    %p144 = scmp.eq.s32.totalorder %s17, 1
    %p145 = por %p143, %p144
    %p146 = scmp.ne.s32.totalorder %s137, %s138
    %p147 = scmp.eq.s32.totalorder %s17, 0
    %p148 = por %p146, %p147
    %p149 = scmp.ne.s32.totalorder %s137, %s138
    %p150 = scmp.eq.s32.totalorder %s18, 1
    %p151 = por %p149, %p150
    %p153 = scmp.ne.s32.totalorder %s138, %s152
    %p154 = scmp.eq.s32.totalorder %s18, 0
    %p155 = por %p153, %p154
    %s156 = ssub.s32 %s12, %s19
    %p157 = scmp.eq.s32.totalorder %s156, 0
    %s159 = sadd.s32 %s158, 1
    %s160 = scalar_select %p157, %s158, %s159
    %p163 = pneg %p157
    %p164 = scmp.eq.s32.totalorder %s12, 1
    %p165 = por %p163, %p164
    %p166 = scmp.ne.s32.totalorder %s158, %s161
    %p167 = scmp.eq.s32.totalorder %s12, 0
    %p168 = por %p166, %p167
    %p169 = scmp.ne.s32.totalorder %s158, %s161
    %p170 = scmp.eq.s32.totalorder %s17, 1
    %p171 = por %p169, %p170
    %p172 = scmp.ne.s32.totalorder %s161, %s162
    %p173 = scmp.eq.s32.totalorder %s17, 0
    %p174 = por %p172, %p173
    %p175 = scmp.ne.s32.totalorder %s161, %s162
    %p176 = scmp.eq.s32.totalorder %s18, 1
    %p177 = por %p175, %p176
    %p179 = scmp.ne.s32.totalorder %s162, %s178
    %p180 = scmp.eq.s32.totalorder %s18, 0
    %p181 = por %p179, %p180
    %p182 = scmp.le.s32.totalorder 1, %s12
    %p183 = scmp.lt.s32.totalorder %s12, 3
    %p184 = pnand %p182, %p183
    %p185 = pneg %p184
    // Predicated region
    $region9: #{transformer_forward.9} parent=5 // pred_check
      _
    $region10: #{transformer_forward.9} parent=5 // pred_check_branch
      %187 = sbr.rel (%p184) target = $region12
    $region11: #{transformer_forward.9} parent=5 // pred_region
      %s188 = ssub.s32 %s12, 1
      // Predicated region
      $region13: #{transformer_forward.9} parent=11 // pred_check
        %p189 = pneg %p85
      $region14: #{transformer_forward.9} parent=11 // pred_check_branch
        %191 = sbr.rel (%p189) target = $region16
      $region15: #{transformer_forward.9} parent=11 // pred_region
        _
      $region16: #{transformer_forward.9} parent=11 // pred_fallthru
        _
      // Predicated region
      $region17: #{transformer_forward.9} parent=11 // pred_check
        %p192 = pneg %p106
      $region18: #{transformer_forward.9} parent=11 // pred_check_branch
        %194 = sbr.rel (%p192) target = $region20
      $region19: #{transformer_forward.9} parent=11 // pred_region
        _
      $region20: #{transformer_forward.9} parent=11 // pred_fallthru
        _
      // Predicated region
      $region21: #{transformer_forward.9} parent=11 // pred_check
        %p195 = pneg %p127
      $region22: #{transformer_forward.9} parent=11 // pred_check_branch
        %197 = sbr.rel (%p195) target = $region24
      $region23: #{transformer_forward.9} parent=11 // pred_region
        _
      $region24: #{transformer_forward.9} parent=11 // pred_fallthru
        _
      // Predicated region
      $region25: #{transformer_forward.9} parent=11 // pred_check
        %p198 = pneg %p148
      $region26: #{transformer_forward.9} parent=11 // pred_check_branch
        %200 = sbr.rel (%p198) target = $region28
      $region27: #{transformer_forward.9} parent=11 // pred_region
        _
      $region28: #{transformer_forward.9} parent=11 // pred_fallthru
        _
    $region12: #{transformer_forward.9} parent=5 // pred_fallthru
      _
    %p201 = scmp.lt.s32.totalorder %s12, 2
    // Predicated region
    $region29: #{transformer_forward.9} parent=5 // pred_check
      %p202 = pneg %p201
    $region30: #{transformer_forward.9} parent=5 // pred_check_branch
      %204 = sbr.rel (%p202) target = $region32
    $region31: #{transformer_forward.9} parent=5 // pred_region
      // Predicated region
      $region33: #{transformer_forward.9} parent=31 // pred_check
        %p205 = pneg %p32
      $region34: #{transformer_forward.9} parent=31 // pred_check_branch
        %207 = sbr.rel (%p205) target = $region36
      $region35: #{transformer_forward.9} parent=31 // pred_region
        %p208 = scmp.lt.s32.totalorder %s12, 1
        %s209 = scalar_select %p208, %s12, 1
        %s210 = smul.addr %s209, 8
        %s211 = scalar_lea.vmem %s0, %s210
      $region36: #{transformer_forward.9} parent=31 // pred_fallthru
        _
      // Predicated region
      $region37: #{transformer_forward.9} parent=31 // pred_check
        %p212 = pneg %p58
      $region38: #{transformer_forward.9} parent=31 // pred_check_branch
        %214 = sbr.rel (%p212) target = $region40
      $region39: #{transformer_forward.9} parent=31 // pred_region
        %p215 = scmp.lt.s32.totalorder %s12, 1
        %s216 = scalar_select %p215, %s12, 1
        %s217 = smul.addr %s216, 8
        %s218 = scalar_lea.vmem %s1, %s217
      $region40: #{transformer_forward.9} parent=31 // pred_fallthru
        _
    $region32: #{transformer_forward.9} parent=5 // pred_fallthru
      _
    %p219 = scmp.le.s32.totalorder 1, %s12
    %p220 = scmp.lt.s32.totalorder %s12, 3
    %p221 = pnand %p219, %p220
    %p222 = pneg %p221
    // Predicated region
    $region41: #{transformer_forward.9} parent=5 // pred_check
      _
    $region42: #{transformer_forward.9} parent=5 // pred_check_branch
      %224 = sbr.rel (%p221) target = $region44
    $region43: #{transformer_forward.9} parent=5 // pred_region
      %s225 = ssub.s32 %s12, 1
      %p226 = scmp.lt.s32.totalorder %s17, 1
      %s227 = scalar_select %p226, %s17, 1
      %s228 = smul.addr %s227, 8
      %s229 = scalar_lea.vmem %s0, %s228
      %p230 = pneg %p38
      %p231 = pneg %p35
      %p232 = scmp.lt.s32.totalorder %s17, 1
      %s233 = scalar_select %p232, %s17, 1
      %s234 = smul.addr %s233, 8
      %s235 = scalar_lea.vmem %s1, %s234
      %p236 = pneg %p64
      %p237 = pneg %p61
      %p238 = pneg %p85
      %p239 = pneg %p82
      %p240 = pneg %p106
      %p241 = pneg %p103
      %p242 = pneg %p127
      %p243 = pneg %p124
      %p244 = pneg %p148
      %p245 = pneg %p145
      %p246 = pneg %p174
      %p247 = pneg %p171
      %p248 = scmp.lt.s32.totalorder %s17, 1
      %s249 = scalar_select %p248, %s17, 1
      %s250 = smul.addr %s249, 8
      %s251 = scalar_lea.vmem %s6, %s250
      %p252 = scmp.lt.s32.totalorder %s17, 1
      %s253 = scalar_select %p252, %s17, 1
      %s254 = smul.addr %s253, 8
      %s255 = scalar_lea.vmem %s0, %s254
      %p256 = scmp.lt.s32.totalorder %s17, 1
      %s257 = scalar_select %p256, %s17, 1
      %s258 = smul.addr %s257, 8
      %s259 = scalar_lea.vmem %s1, %s258
      %p260 = scmp.lt.s32.totalorder %s17, 1
      %s261 = scalar_select %p260, %s17, 1
      %s262 = smul.addr %s261, 8
      %s263 = scalar_lea.vmem %s6, %s262
      %v264 = vld [vmem:[%s255] sm:$0xff]
      %v265 = vld [vmem:[%s2] sm:$0x1]
      %v266 = vld [vmem:[%s3] sm:$0x1]
      %vm267 = vcmask 261120
      %v268 = vsel %vm267, %v264, 0.0
      %269 = vadd.xlane.f32.xlu0 %v268
      %v270 = vpop.xlane.xlu0 %269
      %v271 = vrcp.pop 32.0
      %v272 = vmul.f32 32.0, %v271
      %v273 = vsub.f32 1.0, %v272
      %v274 = vmul.f32 %v271, %v273
      %v275 = vadd.f32 %v271, %v274
      %vm276 = vweird.f32 %v271
      %v277 = vsel %vm276, %v271, %v275
      %v278 = vmul.f32 %v270, %v277
      %v279 = vsub.f32 %v264, %v278
      %v280 = vmul.f32 %v279, %v279
      %v281 = vsel %vm267, %v280, 0.0
      %282 = vadd.xlane.f32.xlu0 %v281
      %v283 = vpop.xlane.xlu0 %282
      %v284 = vmul.f32 %v283, %v277
      %v285 = vadd.f32 %v284, 1e-05
      %v286 = vrsqrt.pop %v285
      %v287 = vmul.f32 %v286, %v285
      %v288 = vmul.f32 %v287, %v286
      %v289 = vmul.f32 0.5, %v288
      %v290 = vsub.f32 1.5, %v289
      %v291 = vmul.f32 %v286, %v290
      %vm292 = vweird.f32 %v285
      %vm293 = vweird.f32 %v286
      %vm294 = vmor %vm292, %vm293
      %v295 = vsel %vm294, %v286, %v291
      %v296 = vmul.f32 %v279, %v295
      %v298 = vperm.slane %v265, 0
      %v300 = vmul.f32 %v296, %v298
      %v302 = vperm.slane %v266, 0
      %v304 = vadd.f32 %v300, %v302
      %v305 = vld [vmem:[%s4] sm:$0xff]
      %v306 = vld [vmem:[%s4 + $0x8] sm:$0xff]
      %v307 = vld [vmem:[%s4 + $0x10] sm:$0xff]
      %v308 = vld [vmem:[%s4 + $0x18] sm:$0xff]
      %v309 = vld [vmem:[%s4 + $0x20] sm:$0xff]
      %v310 = vld [vmem:[%s4 + $0x28] sm:$0xff]
      %v311 = vld [vmem:[%s4 + $0x30] sm:$0xff]
      %v312 = vld [vmem:[%s4 + $0x38] sm:$0xff]
      %v313 = vld [vmem:[%s5] sm:$0x3]
      %v315 = vperm.slane %v313, 0
      %v316 = vperm.slane %v313, 1
      %v320 = vsel %vm267, %v304, 0
      %322 = vmatpush.msra.mxu0 0.0
      %323 = vmatpush.msra.mxu0 0.0
      %324 = vmatpush.msra.mxu0 0.0
      %325 = vmatpush.msra.mxu0 0.0
      %326 = vmatpush.msra.mxu0 0.0
      %327 = vmatpush.msra.mxu0 0.0
      %328 = vmatpush.msra.mxu0 0.0
      %329 = vmatpush.msra.mxu0 0.0
      %330 = vmatpush.msra.mxu0 0.0
      %331 = vmatpush.msra.mxu0 0.0
      %332 = vmatpush.msra.mxu0 0.0
      %333 = vmatpush.msra.mxu0 0.0
      %334 = vmatpush.msra.mxu0 %v311
      %335 = vmatpush.msra.mxu0 %v309
      %336 = vmatpush.msra.mxu0 %v307
      %337 = vmatpush.msra.mxu0 %v305
      %338 = vmatmul.f32.gmra.mxu0 %v320
      %v339 = vpop.f32.mrf.mxu0
      %v340 = vadd.f32 %v315, %v339
      %341 = vdwg.mxu0
      %342 = vmatpush.msra.mxu0 0.0
      %343 = vmatpush.msra.mxu0 0.0
      %344 = vmatpush.msra.mxu0 0.0
      %345 = vmatpush.msra.mxu0 0.0
      %346 = vmatpush.msra.mxu0 0.0
      %347 = vmatpush.msra.mxu0 0.0
      %348 = vmatpush.msra.mxu0 0.0
      %349 = vmatpush.msra.mxu0 0.0
      %350 = vmatpush.msra.mxu0 0.0
      %351 = vmatpush.msra.mxu0 0.0
      %352 = vmatpush.msra.mxu0 0.0
      %353 = vmatpush.msra.mxu0 0.0
      %354 = vmatpush.msra.mxu0 %v312
      %355 = vmatpush.msra.mxu0 %v310
      %356 = vmatpush.msra.mxu0 %v308
      %357 = vmatpush.msra.mxu0 %v306
      %358 = vmatmul.f32.gmra.mxu0 %v320
      %v359 = vpop.f32.mrf.mxu0
      %v360 = vadd.f32 %v316, %v359
      %361 = vdwg.mxu0
      %v362 = vmax.f32 %v340, %v360
      %363 = vmax.xlane.f32.xlu0 %v362
      %v364 = vpop.xlane.xlu0 %363
      %v365 = vsub.f32 %v340, %v364
      %v366 = vsub.f32 %v360, %v364
      %v367 = vmul.f32 %v365, 1.442695
      %v368 = vpow.pop %v367
      %v369 = vmul.f32 %v366, 1.442695
      %v370 = vpow.pop %v369
      %v371 = vadd.f32 %v368, %v370
      %372 = vadd.xlane.f32.xlu0 %v371
      %v373 = vpop.xlane.xlu0 %372
      %v374 = vlog2.pop %v373
      %v375 = vmul.f32 %v374, 0.6931472
      %v376 = vadd.f32 %v375, %v364
      %v377 = vld [vmem:[%s259] sm:$0xff]
      %v378 = vlaneseq
      %v379 = vand.u32 %v378, 127
      %v380 = vadd.s32 %v379, 128
      %381 = vset.pattern.permute.xlu0 0
      %382 = vperm.xlu0 %381, %v377
      %v383 = vpop.permute.xlu0 %382
      %vm384 = vcmp.eq.s32.totalorder %v379, %v383
      %vm385 = vcmp.eq.s32.totalorder %v380, %v383
      %v386 = vsel %vm384, %v340, 0.0
      %v387 = vsel %vm385, %v360, 0.0
      %v388 = vadd.f32 %v386, %v387
      %389 = vadd.xlane.f32.xlu0 %v388
      %v390 = vpop.xlane.xlu0 %389
      %v391 = vsub.f32 %v376, %v390
      %vm392 = vcmask 7168
      %393 = vst.msk [vmem:[%s263] sm:$0xff] %vm392, %v391
      %p394 = scmp.lt.s32.totalorder %s17, 1
      %s395 = scalar_select %p394, %s17, 1
      %s396 = smul.addr %s395, 8
      %s397 = scalar_lea.vmem %s6, %s396
      // Predicated region
      $region45: #{transformer_forward.9} parent=43 // pred_check
        %p398 = pneg %p171
      $region46: #{transformer_forward.9} parent=43 // pred_check_branch
        %400 = sbr.rel (%p398) target = $region48
      $region47: #{transformer_forward.9} parent=43 // pred_region
        _
      $region48: #{transformer_forward.9} parent=43 // pred_fallthru
        _
    $region44: #{transformer_forward.9} parent=5 // pred_fallthru
      _
    %p401 = scmp.le.s32.totalorder 2, %s12
    // Predicated region
    $region49: #{transformer_forward.9} parent=5 // pred_check
      %p402 = pneg %p401
    $region50: #{transformer_forward.9} parent=5 // pred_check_branch
      %404 = sbr.rel (%p402) target = $region52
    $region51: #{transformer_forward.9} parent=5 // pred_region
      %s405 = ssub.s32 %s12, 2
      // Predicated region
      $region53: #{transformer_forward.9} parent=51 // pred_check
        %p406 = pneg %p177
      $region54: #{transformer_forward.9} parent=51 // pred_check_branch
        %408 = sbr.rel (%p406) target = $region56
      $region55: #{transformer_forward.9} parent=51 // pred_region
        %p409 = scmp.lt.s32.totalorder %s18, 1
        %s410 = scalar_select %p409, %s18, 1
        %s411 = smul.addr %s410, 8
        %s412 = scalar_lea.vmem %s6, %s411
      $region56: #{transformer_forward.9} parent=51 // pred_fallthru
        _
    $region52: #{transformer_forward.9} parent=5 // pred_fallthru
      _
  $region6: #{transformer_forward.9} parent=0 // loop_footer
    %s16 = sadd.s32 1, %s12
  $region7: #{transformer_forward.9} parent=0 // loop_footer_branch
    %11 = sbr.rel target = $region3
  $region8: #{transformer_forward.9} parent=0 // loop_exit
    _

// kernel: transformer_forward.6
$region0: #{transformer_forward.6}
  #allocation0 [shape = 'u32[]', space=smem, size = 0x4, offset = 0x4, fixed_abs, tag = 'smem constant byte address 0x4 - core index']
  #allocation1 [shape = 'u32[72,128]{1,0:T(1,128)}', space=vmem, size = 0x9000, scoped, tag = 'internal scratch']
  %s0 = inlined_call_operand.vmem [shape: f32[2,8,32], index: 0, kind: input, shape index: {}]
  %s1 = inlined_call_operand.vmem [shape: f32[1,32], index: 1, kind: input, shape index: {}]
  %s2 = inlined_call_operand.vmem [shape: f32[1,32], index: 2, kind: input, shape index: {}]
  %s3 = inlined_call_operand.vmem [shape: f32[32,128], index: 3, kind: input, shape index: {}]
  %s4 = inlined_call_operand.vmem [shape: f32[1,128], index: 4, kind: input, shape index: {}]
  %s5 = inlined_call_operand.vmem [shape: f32[128,32], index: 5, kind: input, shape index: {}]
  %s6 = inlined_call_operand.vmem [shape: f32[1,32], index: 6, kind: input, shape index: {}]
  %s7 = inlined_call_operand.vmem [shape: f32[2,8,32], index: 7, kind: output, shape index: {}]
  %s8 = sld [smem:[#allocation0]]
  $region61: #{transformer_forward.6} parent=0
    _
  %s10 = ssub.s32 1, %s8
  %s11 = scalar_select 0, %s10, %s8
  loop: start=0, step=1, limit=4
  $region2: #{transformer_forward.6} parent=0 // loop_pre_header
    _
  $region3: #{transformer_forward.6} parent=0 // loop_header
    %s13 = sphi 0, %s17
    %p14 = scmp.ge.s32.totalorder %s13, 4
    %s23 = sphi 0, %s25
    %s26 = sphi 0, %s23
    %s27 = sphi 0, %s26
    %s43 = sphi 0, %s27
    %s47 = sphi 0, %s47
    %s49 = sphi 0, %s47
    %s50 = sphi 0, %s49
    %s64 = sphi 0, %s50
    %s68 = sphi 0, %s68
    %s70 = sphi 0, %s68
    %s71 = sphi 0, %s70
    %s85 = sphi 0, %s71
    %s89 = sphi 0, %s89
    %s91 = sphi 0, %s89
    %s92 = sphi 0, %s91
    %s106 = sphi 0, %s92
    %s110 = sphi 0, %s110
    %s112 = sphi 0, %s110
    %s113 = sphi 0, %s112
    %s127 = sphi 0, %s113
    %s131 = sphi 0, %s131
    %s133 = sphi 0, %s131
    %s134 = sphi 0, %s133
    %s148 = sphi 0, %s134
    %s152 = sphi 0, %s152
    %s154 = sphi 0, %s152
    %s155 = sphi 0, %s154
    %s169 = sphi 0, %s155
    %s175 = sphi 0, %s177
    %s178 = sphi 0, %s175
    %s179 = sphi 0, %s178
    %s195 = sphi 0, %s179
  $region4: #{transformer_forward.6} parent=0 // loop_header_branch
    %16 = sbr.rel (%p14) target = $region8
  $region5: #{transformer_forward.6} parent=0 // loop_body
    %s18 = ssub.s32 %s13, 1
    %s19 = ssub.s32 %s13, 2
    %s20 = sadd.s32 %s13, 1
    %s21 = ssub.s32 %s13, %s20
    %p22 = scmp.eq.s32.totalorder %s21, 0
    %s24 = sadd.s32 %s23, 1
    %s25 = scalar_select %p22, %s23, %s24
    %p28 = pneg %p22
    %p29 = scmp.eq.s32.totalorder %s13, 1
    %p30 = por %p28, %p29
    %p31 = scmp.ne.s32.totalorder %s23, %s26
    %p32 = scmp.eq.s32.totalorder %s13, 0
    %p33 = por %p31, %p32
    %p34 = scmp.ne.s32.totalorder %s23, %s26
    %p35 = scmp.eq.s32.totalorder %s18, 1
    %p36 = por %p34, %p35
    %p37 = scmp.ne.s32.totalorder %s26, %s27
    %p38 = scmp.eq.s32.totalorder %s18, 0
    %p39 = por %p37, %p38
    %p40 = scmp.ne.s32.totalorder %s26, %s27
    %p41 = scmp.eq.s32.totalorder %s19, 1
    %p42 = por %p40, %p41
    %p44 = scmp.ne.s32.totalorder %s27, %s43
    %p45 = scmp.eq.s32.totalorder %s19, 0
    %p46 = por %p44, %p45
    %s48 = sadd.s32 %s47, 1
    %p51 = scmp.eq.s32.totalorder %s13, 1
    %p52 = scmp.ne.s32.totalorder %s47, %s49
    %p53 = scmp.eq.s32.totalorder %s13, 0
    %p54 = por %p52, %p53
    %p55 = scmp.ne.s32.totalorder %s47, %s49
    %p56 = scmp.eq.s32.totalorder %s18, 1
    %p57 = por %p55, %p56
    %p58 = scmp.ne.s32.totalorder %s49, %s50
    %p59 = scmp.eq.s32.totalorder %s18, 0
    %p60 = por %p58, %p59
    %p61 = scmp.ne.s32.totalorder %s49, %s50
    %p62 = scmp.eq.s32.totalorder %s19, 1
    %p63 = por %p61, %p62
    %p65 = scmp.ne.s32.totalorder %s50, %s64
    %p66 = scmp.eq.s32.totalorder %s19, 0
    %p67 = por %p65, %p66
    %s69 = sadd.s32 %s68, 1
    %p72 = scmp.eq.s32.totalorder %s13, 1
    %p73 = scmp.ne.s32.totalorder %s68, %s70
    %p74 = scmp.eq.s32.totalorder %s13, 0
    %p75 = por %p73, %p74
    %p76 = scmp.ne.s32.totalorder %s68, %s70
    %p77 = scmp.eq.s32.totalorder %s18, 1
    %p78 = por %p76, %p77
    %p79 = scmp.ne.s32.totalorder %s70, %s71
    %p80 = scmp.eq.s32.totalorder %s18, 0
    %p81 = por %p79, %p80
    %p82 = scmp.ne.s32.totalorder %s70, %s71
    %p83 = scmp.eq.s32.totalorder %s19, 1
    %p84 = por %p82, %p83
    %p86 = scmp.ne.s32.totalorder %s71, %s85
    %p87 = scmp.eq.s32.totalorder %s19, 0
    %p88 = por %p86, %p87
    %s90 = sadd.s32 %s89, 1
    %p93 = scmp.eq.s32.totalorder %s13, 1
    %p94 = scmp.ne.s32.totalorder %s89, %s91
    %p95 = scmp.eq.s32.totalorder %s13, 0
    %p96 = por %p94, %p95
    %p97 = scmp.ne.s32.totalorder %s89, %s91
    %p98 = scmp.eq.s32.totalorder %s18, 1
    %p99 = por %p97, %p98
    %p100 = scmp.ne.s32.totalorder %s91, %s92
    %p101 = scmp.eq.s32.totalorder %s18, 0
    %p102 = por %p100, %p101
    %p103 = scmp.ne.s32.totalorder %s91, %s92
    %p104 = scmp.eq.s32.totalorder %s19, 1
    %p105 = por %p103, %p104
    %p107 = scmp.ne.s32.totalorder %s92, %s106
    %p108 = scmp.eq.s32.totalorder %s19, 0
    %p109 = por %p107, %p108
    %s111 = sadd.s32 %s110, 1
    %p114 = scmp.eq.s32.totalorder %s13, 1
    %p115 = scmp.ne.s32.totalorder %s110, %s112
    %p116 = scmp.eq.s32.totalorder %s13, 0
    %p117 = por %p115, %p116
    %p118 = scmp.ne.s32.totalorder %s110, %s112
    %p119 = scmp.eq.s32.totalorder %s18, 1
    %p120 = por %p118, %p119
    %p121 = scmp.ne.s32.totalorder %s112, %s113
    %p122 = scmp.eq.s32.totalorder %s18, 0
    %p123 = por %p121, %p122
    %p124 = scmp.ne.s32.totalorder %s112, %s113
    %p125 = scmp.eq.s32.totalorder %s19, 1
    %p126 = por %p124, %p125
    %p128 = scmp.ne.s32.totalorder %s113, %s127
    %p129 = scmp.eq.s32.totalorder %s19, 0
    %p130 = por %p128, %p129
    %s132 = sadd.s32 %s131, 1
    %p135 = scmp.eq.s32.totalorder %s13, 1
    %p136 = scmp.ne.s32.totalorder %s131, %s133
    %p137 = scmp.eq.s32.totalorder %s13, 0
    %p138 = por %p136, %p137
    %p139 = scmp.ne.s32.totalorder %s131, %s133
    %p140 = scmp.eq.s32.totalorder %s18, 1
    %p141 = por %p139, %p140
    %p142 = scmp.ne.s32.totalorder %s133, %s134
    %p143 = scmp.eq.s32.totalorder %s18, 0
    %p144 = por %p142, %p143
    %p145 = scmp.ne.s32.totalorder %s133, %s134
    %p146 = scmp.eq.s32.totalorder %s19, 1
    %p147 = por %p145, %p146
    %p149 = scmp.ne.s32.totalorder %s134, %s148
    %p150 = scmp.eq.s32.totalorder %s19, 0
    %p151 = por %p149, %p150
    %s153 = sadd.s32 %s152, 1
    %p156 = scmp.eq.s32.totalorder %s13, 1
    %p157 = scmp.ne.s32.totalorder %s152, %s154
    %p158 = scmp.eq.s32.totalorder %s13, 0
    %p159 = por %p157, %p158
    %p160 = scmp.ne.s32.totalorder %s152, %s154
    %p161 = scmp.eq.s32.totalorder %s18, 1
    %p162 = por %p160, %p161
    %p163 = scmp.ne.s32.totalorder %s154, %s155
    %p164 = scmp.eq.s32.totalorder %s18, 0
    %p165 = por %p163, %p164
    %p166 = scmp.ne.s32.totalorder %s154, %s155
    %p167 = scmp.eq.s32.totalorder %s19, 1
    %p168 = por %p166, %p167
    %p170 = scmp.ne.s32.totalorder %s155, %s169
    %p171 = scmp.eq.s32.totalorder %s19, 0
    %p172 = por %p170, %p171
    %s173 = ssub.s32 %s13, %s20
    %p174 = scmp.eq.s32.totalorder %s173, 0
    %s176 = sadd.s32 %s175, 1
    %s177 = scalar_select %p174, %s175, %s176
    %p180 = pneg %p174
    %p181 = scmp.eq.s32.totalorder %s13, 1
    %p182 = por %p180, %p181
    %p183 = scmp.ne.s32.totalorder %s175, %s178
    %p184 = scmp.eq.s32.totalorder %s13, 0
    %p185 = por %p183, %p184
    %p186 = scmp.ne.s32.totalorder %s175, %s178
    %p187 = scmp.eq.s32.totalorder %s18, 1
    %p188 = por %p186, %p187
    %p189 = scmp.ne.s32.totalorder %s178, %s179
    %p190 = scmp.eq.s32.totalorder %s18, 0
    %p191 = por %p189, %p190
    %p192 = scmp.ne.s32.totalorder %s178, %s179
    %p193 = scmp.eq.s32.totalorder %s19, 1
    %p194 = por %p192, %p193
    %p196 = scmp.ne.s32.totalorder %s179, %s195
    %p197 = scmp.eq.s32.totalorder %s19, 0
    %p198 = por %p196, %p197
    %p199 = scmp.le.s32.totalorder 1, %s13
    %p200 = scmp.lt.s32.totalorder %s13, 3
    %p201 = pnand %p199, %p200
    %p202 = pneg %p201
    // Predicated region
    $region9: #{transformer_forward.6} parent=5 // pred_check
      _
    $region10: #{transformer_forward.6} parent=5 // pred_check_branch
      %204 = sbr.rel (%p201) target = $region12
    $region11: #{transformer_forward.6} parent=5 // pred_region
      %s205 = ssub.s32 %s13, 1
      // Predicated region
      $region13: #{transformer_forward.6} parent=11 // pred_check
        %p206 = pneg %p60
      $region14: #{transformer_forward.6} parent=11 // pred_check_branch
        %208 = sbr.rel (%p206) target = $region16
      $region15: #{transformer_forward.6} parent=11 // pred_region
        _
      $region16: #{transformer_forward.6} parent=11 // pred_fallthru
        _
      // Predicated region
      $region17: #{transformer_forward.6} parent=11 // pred_check
        %p209 = pneg %p81
      $region18: #{transformer_forward.6} parent=11 // pred_check_branch
        %211 = sbr.rel (%p209) target = $region20
      $region19: #{transformer_forward.6} parent=11 // pred_region
        _
      $region20: #{transformer_forward.6} parent=11 // pred_fallthru
        _
      // Predicated region
      $region21: #{transformer_forward.6} parent=11 // pred_check
        %p212 = pneg %p102
      $region22: #{transformer_forward.6} parent=11 // pred_check_branch
        %214 = sbr.rel (%p212) target = $region24
      $region23: #{transformer_forward.6} parent=11 // pred_region
        _
      $region24: #{transformer_forward.6} parent=11 // pred_fallthru
        _
      // Predicated region
      $region25: #{transformer_forward.6} parent=11 // pred_check
        %p215 = pneg %p123
      $region26: #{transformer_forward.6} parent=11 // pred_check_branch
        %217 = sbr.rel (%p215) target = $region28
      $region27: #{transformer_forward.6} parent=11 // pred_region
        _
      $region28: #{transformer_forward.6} parent=11 // pred_fallthru
        _
      // Predicated region
      $region29: #{transformer_forward.6} parent=11 // pred_check
        %p218 = pneg %p144
      $region30: #{transformer_forward.6} parent=11 // pred_check_branch
        %220 = sbr.rel (%p218) target = $region32
      $region31: #{transformer_forward.6} parent=11 // pred_region
        _
      $region32: #{transformer_forward.6} parent=11 // pred_fallthru
        _
      // Predicated region
      $region33: #{transformer_forward.6} parent=11 // pred_check
        %p221 = pneg %p165
      $region34: #{transformer_forward.6} parent=11 // pred_check_branch
        %223 = sbr.rel (%p221) target = $region36
      $region35: #{transformer_forward.6} parent=11 // pred_region
        _
      $region36: #{transformer_forward.6} parent=11 // pred_fallthru
        _
    $region12: #{transformer_forward.6} parent=5 // pred_fallthru
      _
    %p224 = scmp.lt.s32.totalorder %s13, 2
    // Predicated region
    $region37: #{transformer_forward.6} parent=5 // pred_check
      %p225 = pneg %p224
    $region38: #{transformer_forward.6} parent=5 // pred_check_branch
      %227 = sbr.rel (%p225) target = $region40
    $region39: #{transformer_forward.6} parent=5 // pred_region
      // Predicated region
      $region41: #{transformer_forward.6} parent=39 // pred_check
        %p228 = pneg %p33
      $region42: #{transformer_forward.6} parent=39 // pred_check_branch
        %230 = sbr.rel (%p228) target = $region44
      $region43: #{transformer_forward.6} parent=39 // pred_region
        %p231 = scmp.lt.s32.totalorder %s13, 1
        %s232 = scalar_select %p231, %s13, 1
        %s233 = smul.addr %s232, 8
        %s234 = scalar_lea.vmem %s0, %s233
      $region44: #{transformer_forward.6} parent=39 // pred_fallthru
        _
    $region40: #{transformer_forward.6} parent=5 // pred_fallthru
      _
    %p235 = scmp.le.s32.totalorder 1, %s13
    %p236 = scmp.lt.s32.totalorder %s13, 3
    %p237 = pnand %p235, %p236
    %p238 = pneg %p237
    // Predicated region
    $region45: #{transformer_forward.6} parent=5 // pred_check
      _
    $region46: #{transformer_forward.6} parent=5 // pred_check_branch
      %240 = sbr.rel (%p237) target = $region48
    $region47: #{transformer_forward.6} parent=5 // pred_region
      %s241 = ssub.s32 %s13, 1
      %p242 = scmp.lt.s32.totalorder %s18, 1
      %s243 = scalar_select %p242, %s18, 1
      %s244 = smul.addr %s243, 8
      %s245 = scalar_lea.vmem %s0, %s244
      %p246 = pneg %p39
      %p247 = pneg %p36
      %p248 = pneg %p60
      %p249 = pneg %p57
      %p250 = pneg %p81
      %p251 = pneg %p78
      %p252 = pneg %p102
      %p253 = pneg %p99
      %p254 = pneg %p123
      %p255 = pneg %p120
      %p256 = pneg %p144
      %p257 = pneg %p141
      %p258 = pneg %p165
      %p259 = pneg %p162
      %p260 = pneg %p191
      %p261 = pneg %p188
      %p262 = scmp.lt.s32.totalorder %s18, 1
      %s263 = scalar_select %p262, %s18, 1
      %s264 = smul.addr %s263, 8
      %s265 = scalar_lea.vmem %s7, %s264
      %p266 = scmp.lt.s32.totalorder %s18, 1
      %s267 = scalar_select %p266, %s18, 1
      %s268 = smul.addr %s267, 8
      %s269 = scalar_lea.vmem %s0, %s268
      %p270 = scmp.lt.s32.totalorder %s18, 1
      %s271 = scalar_select %p270, %s18, 1
      %s272 = smul.addr %s271, 8
      %s273 = scalar_lea.vmem %s7, %s272
      %v274 = vld [vmem:[%s269] sm:$0xff]
      %v275 = vld [vmem:[%s1] sm:$0x1]
      %v276 = vld [vmem:[%s2] sm:$0x1]
      %vm277 = vcmask 261120
      %v278 = vsel %vm277, %v274, 0.0
      %279 = vadd.xlane.f32.xlu0 %v278
      %v280 = vpop.xlane.xlu0 %279
      %v281 = vrcp.pop 32.0
      %v282 = vmul.f32 32.0, %v281
      %v283 = vsub.f32 1.0, %v282
      %v284 = vmul.f32 %v281, %v283
      %v285 = vadd.f32 %v281, %v284
      %vm286 = vweird.f32 %v281
      %v287 = vsel %vm286, %v281, %v285
      %v288 = vmul.f32 %v280, %v287
      %v289 = vsub.f32 %v274, %v288
      %v290 = vmul.f32 %v289, %v289
      %v291 = vsel %vm277, %v290, 0.0
      %292 = vadd.xlane.f32.xlu0 %v291
      %v293 = vpop.xlane.xlu0 %292
      %v294 = vmul.f32 %v293, %v287
      %v295 = vadd.f32 %v294, 1e-05
      %v296 = vrsqrt.pop %v295
      %v297 = vmul.f32 %v296, %v295
      %v298 = vmul.f32 %v297, %v296
      %v299 = vmul.f32 0.5, %v298
      %v300 = vsub.f32 1.5, %v299
      %v301 = vmul.f32 %v296, %v300
      %vm302 = vweird.f32 %v295
      %vm303 = vweird.f32 %v296
      %vm304 = vmor %vm302, %vm303
      %v305 = vsel %vm304, %v296, %v301
      %v306 = vmul.f32 %v289, %v305
      %v308 = vperm.slane %v275, 0
      %v310 = vmul.f32 %v306, %v308
      %v312 = vperm.slane %v276, 0
      %v314 = vadd.f32 %v310, %v312
      %v315 = vld [vmem:[%s3] sm:$0xff]
      %v316 = vld [vmem:[%s3 + $0x8] sm:$0xff]
      %v317 = vld [vmem:[%s3 + $0x10] sm:$0xff]
      %v318 = vld [vmem:[%s3 + $0x18] sm:$0xff]
      %v319 = vld [vmem:[%s4] sm:$0x1]
      %v321 = vperm.slane %v319, 0
      %v324 = vsel %vm277, %v314, 0
      %326 = vmatpush.msra.mxu0 0.0
      %327 = vmatpush.msra.mxu0 0.0
      %328 = vmatpush.msra.mxu0 0.0
      %329 = vmatpush.msra.mxu0 0.0
      %330 = vmatpush.msra.mxu0 0.0
      %331 = vmatpush.msra.mxu0 0.0
      %332 = vmatpush.msra.mxu0 0.0
      %333 = vmatpush.msra.mxu0 0.0
      %334 = vmatpush.msra.mxu0 0.0
      %335 = vmatpush.msra.mxu0 0.0
      %336 = vmatpush.msra.mxu0 0.0
      %337 = vmatpush.msra.mxu0 0.0
      %338 = vmatpush.msra.mxu0 %v318
      %339 = vmatpush.msra.mxu0 %v317
      %340 = vmatpush.msra.mxu0 %v316
      %341 = vmatpush.msra.mxu0 %v315
      %342 = vmatmul.f32.gmra.mxu0 %v324
      %v343 = vpop.f32.mrf.mxu0
      %v344 = vadd.f32 %v321, %v343
      %345 = vdwg.mxu0
      %v346 = vmul.f32 %v344, 0.5
      %v347 = vmul.f32 %v344, 0.70710677
      %v348 = vmul.f32 %v347, %v347
      %v349 = vmin.f32 16.0, %v348
      %v350 = vmul.f32 %v349, 2.1237322e-06
      %v351 = vadd.f32 %v350, 0.00028619796
      %v352 = vmul.f32 %v349, %v351
      %v353 = vadd.f32 %v352, 0.0036580483
      %v354 = vmul.f32 %v349, %v353
      %v355 = vadd.f32 %v354, 0.05243302
      %v356 = vmul.f32 %v349, %v355
      %v357 = vadd.f32 %v356, 0.18741608
      %v358 = vmul.f32 %v349, %v357
      %v359 = vadd.f32 %v358, 1.1283791
      %v360 = vmul.f32 %v347, %v359
      %v361 = vmul.f32 %v349, 3.8918573e-05
      %v362 = vadd.f32 %v361, 0.001143296
      %v363 = vmul.f32 %v349, %v362
      %v364 = vadd.f32 %v363, 0.014752088
      %v365 = vmul.f32 %v349, %v364
      %v366 = vadd.f32 %v365, 0.112945676
      %v367 = vmul.f32 %v349, %v366
      %v368 = vadd.f32 %v367, 0.4994258
      %v369 = vmul.f32 %v349, %v368
      %v370 = vadd.f32 %v369, 1.0
      %v371 = vrcp.pop %v370
      %v372 = vmul.f32 %v370, %v371
      %v373 = vsub.f32 1.0, %v372
      %v374 = vmul.f32 %v371, %v373
      %v375 = vadd.f32 %v371, %v374
      %vm376 = vweird.f32 %v370
      %vm377 = vweird.f32 %v371
      %vm378 = vmor %vm376, %vm377
      %v379 = vsel %vm378, %v371, %v375
      %v380 = vand.u32 2147483647, %v370
      %vm381 = vcmp.eq.f32.partialorder %v380, 8.507059e+37
      %v382 = vand.u32 %v370, 2147483648
      %v383 = vor.u32 1.1754944e-38, %v382
      %v384 = vsel %vm381, %v383, %v379
      %v385 = vmul.f32 %v360, %v384
      %v386 = vmin.f32 %v385, 1.0
      %v387 = vmax.f32 %v386, -1.0
      %v388 = vadd.f32 %v387, 1.0
      %v389 = vmul.f32 %v346, %v388
      %v390 = vld [vmem:[%s5] sm:$0xff]
      %v391 = vld [vmem:[%s5 + $0x8] sm:$0xff]
      %v392 = vld [vmem:[%s5 + $0x10] sm:$0xff]
      %v393 = vld [vmem:[%s5 + $0x18] sm:$0xff]
      %v394 = vld [vmem:[%s5 + $0x20] sm:$0xff]
      %v395 = vld [vmem:[%s5 + $0x28] sm:$0xff]
      %v396 = vld [vmem:[%s5 + $0x30] sm:$0xff]
      %v397 = vld [vmem:[%s5 + $0x38] sm:$0xff]
      %v398 = vld [vmem:[%s5 + $0x40] sm:$0xff]
      %v399 = vld [vmem:[%s5 + $0x48] sm:$0xff]
      %v400 = vld [vmem:[%s5 + $0x50] sm:$0xff]
      %v401 = vld [vmem:[%s5 + $0x58] sm:$0xff]
      %v402 = vld [vmem:[%s5 + $0x60] sm:$0xff]
      %v403 = vld [vmem:[%s5 + $0x68] sm:$0xff]
      %v404 = vld [vmem:[%s5 + $0x70] sm:$0xff]
      %v405 = vld [vmem:[%s5 + $0x78] sm:$0xff]
      %v406 = vld [vmem:[%s6] sm:$0x1]
      %v408 = vperm.slane %v406, 0
      %410 = vmatpush.msra.mxu0 %v405
      %411 = vmatpush.msra.mxu0 %v404
      %412 = vmatpush.msra.mxu0 %v403
      %413 = vmatpush.msra.mxu0 %v402
      %414 = vmatpush.msra.mxu0 %v401
      %415 = vmatpush.msra.mxu0 %v400
      %416 = vmatpush.msra.mxu0 %v399
      %417 = vmatpush.msra.mxu0 %v398
      %418 = vmatpush.msra.mxu0 %v397
      %419 = vmatpush.msra.mxu0 %v396
      %420 = vmatpush.msra.mxu0 %v395
      %421 = vmatpush.msra.mxu0 %v394
      %422 = vmatpush.msra.mxu0 %v393
      %423 = vmatpush.msra.mxu0 %v392
      %424 = vmatpush.msra.mxu0 %v391
      %425 = vmatpush.msra.mxu0 %v390
      %426 = vmatmul.f32.gmra.mxu0 %v389
      %v427 = vpop.f32.mrf.mxu0
      %v428 = vadd.f32 %v408, %v427
      %429 = vdwg.mxu0
      %v430 = vadd.f32 %v428, %v274
      %431 = vst.msk [vmem:[%s273] sm:$0xff] %vm277, %v430
      %p432 = scmp.lt.s32.totalorder %s18, 1
      %s433 = scalar_select %p432, %s18, 1
      %s434 = smul.addr %s433, 8
      %s435 = scalar_lea.vmem %s7, %s434
      // Predicated region
      $region49: #{transformer_forward.6} parent=47 // pred_check
        %p436 = pneg %p188
      $region50: #{transformer_forward.6} parent=47 // pred_check_branch
        %438 = sbr.rel (%p436) target = $region52
      $region51: #{transformer_forward.6} parent=47 // pred_region
        _
      $region52: #{transformer_forward.6} parent=47 // pred_fallthru
        _
    $region48: #{transformer_forward.6} parent=5 // pred_fallthru
      _
    %p439 = scmp.le.s32.totalorder 2, %s13
    // Predicated region
    $region53: #{transformer_forward.6} parent=5 // pred_check
      %p440 = pneg %p439
    $region54: #{transformer_forward.6} parent=5 // pred_check_branch
      %442 = sbr.rel (%p440) target = $region56
    $region55: #{transformer_forward.6} parent=5 // pred_region
      %s443 = ssub.s32 %s13, 2
      // Predicated region
      $region57: #{transformer_forward.6} parent=55 // pred_check
        %p444 = pneg %p194
      $region58: #{transformer_forward.6} parent=55 // pred_check_branch
        %446 = sbr.rel (%p444) target = $region60
      $region59: #{transformer_forward.6} parent=55 // pred_region
        %p447 = scmp.lt.s32.totalorder %s19, 1
        %s448 = scalar_select %p447, %s19, 1
        %s449 = smul.addr %s448, 8
        %s450 = scalar_lea.vmem %s7, %s449
      $region60: #{transformer_forward.6} parent=55 // pred_fallthru
        _
    $region56: #{transformer_forward.6} parent=5 // pred_fallthru
      _
  $region6: #{transformer_forward.6} parent=0 // loop_footer
    %s17 = sadd.s32 1, %s13
  $region7: #{transformer_forward.6} parent=0 // loop_footer_branch
    %12 = sbr.rel target = $region3
  $region8: #{transformer_forward.6} parent=0 // loop_exit
    _

// kernel: transformer_forward.5
$region0: #{transformer_forward.5}
  #allocation0 [shape = 'u32[]', space=smem, size = 0x4, offset = 0x4, fixed_abs, tag = 'smem constant byte address 0x4 - core index']
  #allocation1 [shape = 'u32[72,128]{1,0:T(1,128)}', space=vmem, size = 0x9000, scoped, tag = 'internal scratch']
  %s0 = inlined_call_operand.vmem [shape: f32[2,8,32], index: 0, kind: input, shape index: {}]
  %s1 = inlined_call_operand.vmem [shape: f32[32,192], index: 1, kind: input, shape index: {}]
  %s2 = inlined_call_operand.vmem [shape: f32[64,32], index: 2, kind: input, shape index: {}]
  %s3 = inlined_call_operand.vmem [shape: f32[2,8,32], index: 3, kind: output, shape index: {}]
  %s4 = sld [smem:[#allocation0]]
  $region45: #{transformer_forward.5} parent=0
    _
  %s6 = ssub.s32 1, %s4
  %s7 = scalar_select 0, %s6, %s4
  loop: start=0, step=1, limit=4
  $region2: #{transformer_forward.5} parent=0 // loop_pre_header
    _
  $region3: #{transformer_forward.5} parent=0 // loop_header
    %s9 = sphi 0, %s13
    %p10 = scmp.ge.s32.totalorder %s9, 4
    %s19 = sphi 0, %s21
    %s22 = sphi 0, %s19
    %s23 = sphi 0, %s22
    %s39 = sphi 0, %s23
    %s43 = sphi 0, %s43
    %s45 = sphi 0, %s43
    %s46 = sphi 0, %s45
    %s60 = sphi 0, %s46
    %s64 = sphi 0, %s64
    %s66 = sphi 0, %s64
    %s67 = sphi 0, %s66
    %s81 = sphi 0, %s67
    %s87 = sphi 0, %s89
    %s90 = sphi 0, %s87
    %s91 = sphi 0, %s90
    %s107 = sphi 0, %s91
  $region4: #{transformer_forward.5} parent=0 // loop_header_branch
    %12 = sbr.rel (%p10) target = $region8
  $region5: #{transformer_forward.5} parent=0 // loop_body
    %s14 = ssub.s32 %s9, 1
    %s15 = ssub.s32 %s9, 2
    %s16 = sadd.s32 %s9, 1
    %s17 = ssub.s32 %s9, %s16
    %p18 = scmp.eq.s32.totalorder %s17, 0
    %s20 = sadd.s32 %s19, 1
    %s21 = scalar_select %p18, %s19, %s20
    %p24 = pneg %p18
    %p25 = scmp.eq.s32.totalorder %s9, 1
    %p26 = por %p24, %p25
    %p27 = scmp.ne.s32.totalorder %s19, %s22
    %p28 = scmp.eq.s32.totalorder %s9, 0
    %p29 = por %p27, %p28
    %p30 = scmp.ne.s32.totalorder %s19, %s22
    %p31 = scmp.eq.s32.totalorder %s14, 1
    %p32 = por %p30, %p31
    %p33 = scmp.ne.s32.totalorder %s22, %s23
    %p34 = scmp.eq.s32.totalorder %s14, 0
    %p35 = por %p33, %p34
    %p36 = scmp.ne.s32.totalorder %s22, %s23
    %p37 = scmp.eq.s32.totalorder %s15, 1
    %p38 = por %p36, %p37
    %p40 = scmp.ne.s32.totalorder %s23, %s39
    %p41 = scmp.eq.s32.totalorder %s15, 0
    %p42 = por %p40, %p41
    %s44 = sadd.s32 %s43, 1
    %p47 = scmp.eq.s32.totalorder %s9, 1
    %p48 = scmp.ne.s32.totalorder %s43, %s45
    %p49 = scmp.eq.s32.totalorder %s9, 0
    %p50 = por %p48, %p49
    %p51 = scmp.ne.s32.totalorder %s43, %s45
    %p52 = scmp.eq.s32.totalorder %s14, 1
    %p53 = por %p51, %p52
    %p54 = scmp.ne.s32.totalorder %s45, %s46
    %p55 = scmp.eq.s32.totalorder %s14, 0
    %p56 = por %p54, %p55
    %p57 = scmp.ne.s32.totalorder %s45, %s46
    %p58 = scmp.eq.s32.totalorder %s15, 1
    %p59 = por %p57, %p58
    %p61 = scmp.ne.s32.totalorder %s46, %s60
    %p62 = scmp.eq.s32.totalorder %s15, 0
    %p63 = por %p61, %p62
    %s65 = sadd.s32 %s64, 1
    %p68 = scmp.eq.s32.totalorder %s9, 1
    %p69 = scmp.ne.s32.totalorder %s64, %s66
    %p70 = scmp.eq.s32.totalorder %s9, 0
    %p71 = por %p69, %p70
    %p72 = scmp.ne.s32.totalorder %s64, %s66
    %p73 = scmp.eq.s32.totalorder %s14, 1
    %p74 = por %p72, %p73
    %p75 = scmp.ne.s32.totalorder %s66, %s67
    %p76 = scmp.eq.s32.totalorder %s14, 0
    %p77 = por %p75, %p76
    %p78 = scmp.ne.s32.totalorder %s66, %s67
    %p79 = scmp.eq.s32.totalorder %s15, 1
    %p80 = por %p78, %p79
    %p82 = scmp.ne.s32.totalorder %s67, %s81
    %p83 = scmp.eq.s32.totalorder %s15, 0
    %p84 = por %p82, %p83
    %s85 = ssub.s32 %s9, %s16
    %p86 = scmp.eq.s32.totalorder %s85, 0
    %s88 = sadd.s32 %s87, 1
    %s89 = scalar_select %p86, %s87, %s88
    %p92 = pneg %p86
    %p93 = scmp.eq.s32.totalorder %s9, 1
    %p94 = por %p92, %p93
    %p95 = scmp.ne.s32.totalorder %s87, %s90
    %p96 = scmp.eq.s32.totalorder %s9, 0
    %p97 = por %p95, %p96
    %p98 = scmp.ne.s32.totalorder %s87, %s90
    %p99 = scmp.eq.s32.totalorder %s14, 1
    %p100 = por %p98, %p99
    %p101 = scmp.ne.s32.totalorder %s90, %s91
    %p102 = scmp.eq.s32.totalorder %s14, 0
    %p103 = por %p101, %p102
    %p104 = scmp.ne.s32.totalorder %s90, %s91
    %p105 = scmp.eq.s32.totalorder %s15, 1
    %p106 = por %p104, %p105
    %p108 = scmp.ne.s32.totalorder %s91, %s107
    %p109 = scmp.eq.s32.totalorder %s15, 0
    %p110 = por %p108, %p109
    %p111 = scmp.le.s32.totalorder 1, %s9
    %p112 = scmp.lt.s32.totalorder %s9, 3
    %p113 = pnand %p111, %p112
    %p114 = pneg %p113
    // Predicated region
    $region9: #{transformer_forward.5} parent=5 // pred_check
      _
    $region10: #{transformer_forward.5} parent=5 // pred_check_branch
      %116 = sbr.rel (%p113) target = $region12
    $region11: #{transformer_forward.5} parent=5 // pred_region
      %s117 = ssub.s32 %s9, 1
      // Predicated region
      $region13: #{transformer_forward.5} parent=11 // pred_check
        %p118 = pneg %p56
      $region14: #{transformer_forward.5} parent=11 // pred_check_branch
        %120 = sbr.rel (%p118) target = $region16
      $region15: #{transformer_forward.5} parent=11 // pred_region
        _
      $region16: #{transformer_forward.5} parent=11 // pred_fallthru
        _
      // Predicated region
      $region17: #{transformer_forward.5} parent=11 // pred_check
        %p121 = pneg %p77
      $region18: #{transformer_forward.5} parent=11 // pred_check_branch
        %123 = sbr.rel (%p121) target = $region20
      $region19: #{transformer_forward.5} parent=11 // pred_region
        _
      $region20: #{transformer_forward.5} parent=11 // pred_fallthru
        _
    $region12: #{transformer_forward.5} parent=5 // pred_fallthru
      _
    %p124 = scmp.lt.s32.totalorder %s9, 2
    // Predicated region
    $region21: #{transformer_forward.5} parent=5 // pred_check
      %p125 = pneg %p124
    $region22: #{transformer_forward.5} parent=5 // pred_check_branch
      %127 = sbr.rel (%p125) target = $region24
    $region23: #{transformer_forward.5} parent=5 // pred_region
      // Predicated region
      $region25: #{transformer_forward.5} parent=23 // pred_check
        %p128 = pneg %p29
      $region26: #{transformer_forward.5} parent=23 // pred_check_branch
        %130 = sbr.rel (%p128) target = $region28
      $region27: #{transformer_forward.5} parent=23 // pred_region
        %p131 = scmp.lt.s32.totalorder %s9, 1
        %s132 = scalar_select %p131, %s9, 1
        %s133 = smul.addr %s132, 8
        %s134 = scalar_lea.vmem %s0, %s133
      $region28: #{transformer_forward.5} parent=23 // pred_fallthru
        _
    $region24: #{transformer_forward.5} parent=5 // pred_fallthru
      _
    %p135 = scmp.le.s32.totalorder 1, %s9
    %p136 = scmp.lt.s32.totalorder %s9, 3
    %p137 = pnand %p135, %p136
    %p138 = pneg %p137
    // Predicated region
    $region29: #{transformer_forward.5} parent=5 // pred_check
      _
    $region30: #{transformer_forward.5} parent=5 // pred_check_branch
      %140 = sbr.rel (%p137) target = $region32
    $region31: #{transformer_forward.5} parent=5 // pred_region
      %s141 = ssub.s32 %s9, 1
      %p142 = scmp.lt.s32.totalorder %s14, 1
      %s143 = scalar_select %p142, %s14, 1
      %s144 = smul.addr %s143, 8
      %s145 = scalar_lea.vmem %s0, %s144
      %p146 = pneg %p35
      %p147 = pneg %p32
      %p148 = pneg %p56
      %p149 = pneg %p53
      %p150 = pneg %p77
      %p151 = pneg %p74
      %p152 = pneg %p103
      %p153 = pneg %p100
      %p154 = scmp.lt.s32.totalorder %s14, 1
      %s155 = scalar_select %p154, %s14, 1
      %s156 = smul.addr %s155, 8
      %s157 = scalar_lea.vmem %s3, %s156
      %p158 = scmp.lt.s32.totalorder %s14, 1
      %s159 = scalar_select %p158, %s14, 1
      %s160 = smul.addr %s159, 8
      %s161 = scalar_lea.vmem %s0, %s160
      %p162 = scmp.lt.s32.totalorder %s14, 1
      %s163 = scalar_select %p162, %s14, 1
      %s164 = smul.addr %s163, 8
      %s165 = scalar_lea.vmem %s3, %s164
      %v166 = vld [vmem:[%s161] sm:$0xff]
      %v167 = vld [vmem:[%s1] sm:$0xff]
      %v168 = vld [vmem:[%s1 + $0x8] sm:$0xff]
      %v169 = vld [vmem:[%s1 + $0x10] sm:$0xff]
      %v170 = vld [vmem:[%s1 + $0x18] sm:$0xff]
      %v171 = vld [vmem:[%s1 + $0x20] sm:$0xff]
      %v172 = vld [vmem:[%s1 + $0x28] sm:$0xff]
      %v173 = vld [vmem:[%s1 + $0x30] sm:$0xff]
      %v174 = vld [vmem:[%s1 + $0x38] sm:$0xff]
      %vm175 = vcmask 261120
      %v177 = vsel %vm175, %v166, 0
      %179 = vmatpush.msra.mxu0 0.0
      %180 = vmatpush.msra.mxu0 0.0
      %181 = vmatpush.msra.mxu0 0.0
      %182 = vmatpush.msra.mxu0 0.0
      %183 = vmatpush.msra.mxu0 0.0
      %184 = vmatpush.msra.mxu0 0.0
      %185 = vmatpush.msra.mxu0 0.0
      %186 = vmatpush.msra.mxu0 0.0
      %187 = vmatpush.msra.mxu0 0.0
      %188 = vmatpush.msra.mxu0 0.0
      %189 = vmatpush.msra.mxu0 0.0
      %190 = vmatpush.msra.mxu0 0.0
      %191 = vmatpush.msra.mxu0 %v173
      %192 = vmatpush.msra.mxu0 %v171
      %193 = vmatpush.msra.mxu0 %v169
      %194 = vmatpush.msra.mxu0 %v167
      %195 = vmatmul.f32.gmra.mxu0 %v177
      %v196 = vpop.f32.mrf.mxu0
      %v197 = vadd.f32 0.0, %v196
      %198 = vdwg.mxu0
      %199 = vmatpush.msra.mxu0 0.0
      %200 = vmatpush.msra.mxu0 0.0
      %201 = vmatpush.msra.mxu0 0.0
      %202 = vmatpush.msra.mxu0 0.0
      %203 = vmatpush.msra.mxu0 0.0
      %204 = vmatpush.msra.mxu0 0.0
      %205 = vmatpush.msra.mxu0 0.0
      %206 = vmatpush.msra.mxu0 0.0
      %207 = vmatpush.msra.mxu0 0.0
      %208 = vmatpush.msra.mxu0 0.0
      %209 = vmatpush.msra.mxu0 0.0
      %210 = vmatpush.msra.mxu0 0.0
      %211 = vmatpush.msra.mxu0 %v174
      %212 = vmatpush.msra.mxu0 %v172
      %213 = vmatpush.msra.mxu0 %v170
      %214 = vmatpush.msra.mxu0 %v168
      %215 = vmatmul.f32.gmra.mxu0 %v177
      %v216 = vpop.f32.mrf.mxu0
      %v217 = vadd.f32 0.0, %v216
      %218 = vdwg.mxu0
      %v219 = vlaneseq
      %v220 = vshrl.u32 %v219, 7
      %v221 = vlaneseq
      %v222 = vand.u32 %v221, 127
      %vm223 = vcmp.gt.s32.totalorder %v222, %v220
      %v224 = vmul.f32 %v197, 0.25
      %226 = vrot.lane.b32.xlu0 %v197, 64
      %v227 = vpop.permute.xlu0 %226
      %vm228 = vcmask 130048
      %v230 = vsel %vm228, %v224, 0
      %v232 = vsel %vm228, %v227, 0
      %234 = vmatpush.xpose.msra.mxu0 0.0
      %235 = vmatpush.xpose.msra.mxu0 0.0
      %236 = vmatpush.xpose.msra.mxu0 0.0
      %237 = vmatpush.xpose.msra.mxu0 0.0
      %238 = vmatpush.xpose.msra.mxu0 0.0
      %239 = vmatpush.xpose.msra.mxu0 0.0
      %240 = vmatpush.xpose.msra.mxu0 0.0
      %241 = vmatpush.xpose.msra.mxu0 0.0
      %242 = vmatpush.xpose.msra.mxu0 0.0
      %243 = vmatpush.xpose.msra.mxu0 0.0
      %244 = vmatpush.xpose.msra.mxu0 0.0
      %245 = vmatpush.xpose.msra.mxu0 0.0
      %246 = vmatpush.xpose.msra.mxu0 0.0
      %247 = vmatpush.xpose.msra.mxu0 0.0
      %248 = vmatpush.xpose.msra.mxu0 0.0
      %249 = vmatpush.xpose.msra.mxu0 %v232
      %250 = vmatmul.f32.gmra.mxu0 %v230
      %v251 = vpop.f32.mrf.mxu0
      %v252 = vadd.f32 0.0, %v251
      %253 = vdwg.mxu0
      %v254 = vsel %vm223, -1e+30, %v252
      %vm255 = vcmask 64512
      %v256 = vsel %vm255, %v254, -inf
      %257 = vmax.xlane.f32.xlu0 %v256
      %v258 = vpop.xlane.xlu0 %257
      %v259 = vsub.f32 %v254, %v258
      %v260 = vmul.f32 %v259, 1.442695
      %v261 = vpow.pop %v260
      %v262 = vsel %vm255, %v261, 0.0
      %263 = vadd.xlane.f32.xlu0 %v262
      %v264 = vpop.xlane.xlu0 %263
      %v265 = vrcp.pop %v264
      %v266 = vmul.f32 %v261, %v265
      %v268 = vsel %vm255, %v266, 0
      %270 = vmatpush.msra.mxu0 0.0
      %271 = vmatpush.msra.mxu0 0.0
      %272 = vmatpush.msra.mxu0 0.0
      %273 = vmatpush.msra.mxu0 0.0
      %274 = vmatpush.msra.mxu0 0.0
      %275 = vmatpush.msra.mxu0 0.0
      %276 = vmatpush.msra.mxu0 0.0
      %277 = vmatpush.msra.mxu0 0.0
      %278 = vmatpush.msra.mxu0 0.0
      %279 = vmatpush.msra.mxu0 0.0
      %280 = vmatpush.msra.mxu0 0.0
      %281 = vmatpush.msra.mxu0 0.0
      %282 = vmatpush.msra.mxu0 0.0
      %283 = vmatpush.msra.mxu0 0.0
      %284 = vmatpush.msra.mxu0 0.0
      %285 = vmatpush.msra.mxu0 %v217
      %286 = vmatmul.f32.gmra.mxu0 %v268
      %v287 = vpop.f32.mrf.mxu0
      %v288 = vadd.f32 0.0, %v287
      %289 = vdwg.mxu0
      %290 = vrot.lane.b32.xlu0 %v224, 112
      %v291 = vpop.permute.xlu0 %290
      %292 = vrot.lane.b32.xlu0 %v197, 48
      %v293 = vpop.permute.xlu0 %292
      %v294 = vsel %vm228, %v291, 0
      %v296 = vsel %vm228, %v293, 0
      %298 = vmatpush.xpose.msra.mxu0 0.0
      %299 = vmatpush.xpose.msra.mxu0 0.0
      %300 = vmatpush.xpose.msra.mxu0 0.0
      %301 = vmatpush.xpose.msra.mxu0 0.0
      %302 = vmatpush.xpose.msra.mxu0 0.0
      %303 = vmatpush.xpose.msra.mxu0 0.0
      %304 = vmatpush.xpose.msra.mxu0 0.0
      %305 = vmatpush.xpose.msra.mxu0 0.0
      %306 = vmatpush.xpose.msra.mxu0 0.0
      %307 = vmatpush.xpose.msra.mxu0 0.0
      %308 = vmatpush.xpose.msra.mxu0 0.0
      %309 = vmatpush.xpose.msra.mxu0 0.0
      %310 = vmatpush.xpose.msra.mxu0 0.0
      %311 = vmatpush.xpose.msra.mxu0 0.0
      %312 = vmatpush.xpose.msra.mxu0 0.0
      %313 = vmatpush.xpose.msra.mxu0 %v296
      %314 = vmatmul.f32.gmra.mxu0 %v294
      %v315 = vpop.f32.mrf.mxu0
      %v316 = vadd.f32 0.0, %v315
      %317 = vdwg.mxu0
      %v318 = vsel %vm223, -1e+30, %v316
      %v319 = vsel %vm255, %v318, -inf
      %320 = vmax.xlane.f32.xlu0 %v319
      %v321 = vpop.xlane.xlu0 %320
      %v322 = vsub.f32 %v318, %v321
      %v323 = vmul.f32 %v322, 1.442695
      %v324 = vpow.pop %v323
      %v325 = vsel %vm255, %v324, 0.0
      %326 = vadd.xlane.f32.xlu0 %v325
      %v327 = vpop.xlane.xlu0 %326
      %v328 = vrcp.pop %v327
      %v329 = vmul.f32 %v324, %v328
      %331 = vrot.lane.b32.xlu0 %v217, 112
      %v332 = vpop.permute.xlu0 %331
      %v335 = vsel %vm255, %v329, 0
      %337 = vmatpush.msra.mxu0 0.0
      %338 = vmatpush.msra.mxu0 0.0
      %339 = vmatpush.msra.mxu0 0.0
      %340 = vmatpush.msra.mxu0 0.0
      %341 = vmatpush.msra.mxu0 0.0
      %342 = vmatpush.msra.mxu0 0.0
      %343 = vmatpush.msra.mxu0 0.0
      %344 = vmatpush.msra.mxu0 0.0
      %345 = vmatpush.msra.mxu0 0.0
      %346 = vmatpush.msra.mxu0 0.0
      %347 = vmatpush.msra.mxu0 0.0
      %348 = vmatpush.msra.mxu0 0.0
      %349 = vmatpush.msra.mxu0 0.0
      %350 = vmatpush.msra.mxu0 0.0
      %351 = vmatpush.msra.mxu0 0.0
      %352 = vmatpush.msra.mxu0 %v332
      %353 = vmatmul.f32.gmra.mxu0 %v335
      %v354 = vpop.f32.mrf.mxu0
      %v355 = vadd.f32 0.0, %v354
      %356 = vdwg.mxu0
      %357 = vrot.lane.b32.xlu0 %v224, 96
      %v358 = vpop.permute.xlu0 %357
      %359 = vrot.lane.b32.xlu0 %v197, 32
      %v360 = vpop.permute.xlu0 %359
      %v361 = vsel %vm228, %v358, 0
      %v363 = vsel %vm228, %v360, 0
      %365 = vmatpush.xpose.msra.mxu0 0.0
      %366 = vmatpush.xpose.msra.mxu0 0.0
      %367 = vmatpush.xpose.msra.mxu0 0.0
      %368 = vmatpush.xpose.msra.mxu0 0.0
      %369 = vmatpush.xpose.msra.mxu0 0.0
      %370 = vmatpush.xpose.msra.mxu0 0.0
      %371 = vmatpush.xpose.msra.mxu0 0.0
      %372 = vmatpush.xpose.msra.mxu0 0.0
      %373 = vmatpush.xpose.msra.mxu0 0.0
      %374 = vmatpush.xpose.msra.mxu0 0.0
      %375 = vmatpush.xpose.msra.mxu0 0.0
      %376 = vmatpush.xpose.msra.mxu0 0.0
      %377 = vmatpush.xpose.msra.mxu0 0.0
      %378 = vmatpush.xpose.msra.mxu0 0.0
      %379 = vmatpush.xpose.msra.mxu0 0.0
      %380 = vmatpush.xpose.msra.mxu0 %v363
      %381 = vmatmul.f32.gmra.mxu0 %v361
      %v382 = vpop.f32.mrf.mxu0
      %v383 = vadd.f32 0.0, %v382
      %384 = vdwg.mxu0
      %v385 = vsel %vm223, -1e+30, %v383
      %v386 = vsel %vm255, %v385, -inf
      %387 = vmax.xlane.f32.xlu0 %v386
      %v388 = vpop.xlane.xlu0 %387
      %v389 = vsub.f32 %v385, %v388
      %v390 = vmul.f32 %v389, 1.442695
      %v391 = vpow.pop %v390
      %v392 = vsel %vm255, %v391, 0.0
      %393 = vadd.xlane.f32.xlu0 %v392
      %v394 = vpop.xlane.xlu0 %393
      %v395 = vrcp.pop %v394
      %v396 = vmul.f32 %v391, %v395
      %397 = vrot.lane.b32.xlu0 %v217, 96
      %v398 = vpop.permute.xlu0 %397
      %v401 = vsel %vm255, %v396, 0
      %403 = vmatpush.msra.mxu0 0.0
      %404 = vmatpush.msra.mxu0 0.0
      %405 = vmatpush.msra.mxu0 0.0
      %406 = vmatpush.msra.mxu0 0.0
      %407 = vmatpush.msra.mxu0 0.0
      %408 = vmatpush.msra.mxu0 0.0
      %409 = vmatpush.msra.mxu0 0.0
      %410 = vmatpush.msra.mxu0 0.0
      %411 = vmatpush.msra.mxu0 0.0
      %412 = vmatpush.msra.mxu0 0.0
      %413 = vmatpush.msra.mxu0 0.0
      %414 = vmatpush.msra.mxu0 0.0
      %415 = vmatpush.msra.mxu0 0.0
      %416 = vmatpush.msra.mxu0 0.0
      %417 = vmatpush.msra.mxu0 0.0
      %418 = vmatpush.msra.mxu0 %v398
      %419 = vmatmul.f32.gmra.mxu0 %v401
      %v420 = vpop.f32.mrf.mxu0
      %v421 = vadd.f32 0.0, %v420
      %422 = vdwg.mxu0
      %423 = vrot.lane.b32.xlu0 %v224, 80
      %v424 = vpop.permute.xlu0 %423
      %425 = vrot.lane.b32.xlu0 %v197, 16
      %v426 = vpop.permute.xlu0 %425
      %v427 = vsel %vm228, %v424, 0
      %v429 = vsel %vm228, %v426, 0
      %431 = vmatpush.xpose.msra.mxu0 0.0
      %432 = vmatpush.xpose.msra.mxu0 0.0
      %433 = vmatpush.xpose.msra.mxu0 0.0
      %434 = vmatpush.xpose.msra.mxu0 0.0
      %435 = vmatpush.xpose.msra.mxu0 0.0
      %436 = vmatpush.xpose.msra.mxu0 0.0
      %437 = vmatpush.xpose.msra.mxu0 0.0
      %438 = vmatpush.xpose.msra.mxu0 0.0
      %439 = vmatpush.xpose.msra.mxu0 0.0
      %440 = vmatpush.xpose.msra.mxu0 0.0
      %441 = vmatpush.xpose.msra.mxu0 0.0
      %442 = vmatpush.xpose.msra.mxu0 0.0
      %443 = vmatpush.xpose.msra.mxu0 0.0
      %444 = vmatpush.xpose.msra.mxu0 0.0
      %445 = vmatpush.xpose.msra.mxu0 0.0
      %446 = vmatpush.xpose.msra.mxu0 %v429
      %447 = vmatmul.f32.gmra.mxu0 %v427
      %v448 = vpop.f32.mrf.mxu0
      %v449 = vadd.f32 0.0, %v448
      %450 = vdwg.mxu0
      %v451 = vsel %vm223, -1e+30, %v449
      %v452 = vsel %vm255, %v451, -inf
      %453 = vmax.xlane.f32.xlu0 %v452
      %v454 = vpop.xlane.xlu0 %453
      %v455 = vsub.f32 %v451, %v454
      %v456 = vmul.f32 %v455, 1.442695
      %v457 = vpow.pop %v456
      %v458 = vsel %vm255, %v457, 0.0
      %459 = vadd.xlane.f32.xlu0 %v458
      %v460 = vpop.xlane.xlu0 %459
      %v461 = vrcp.pop %v460
      %v462 = vmul.f32 %v457, %v461
      %463 = vrot.lane.b32.xlu0 %v217, 80
      %v464 = vpop.permute.xlu0 %463
      %v467 = vsel %vm255, %v462, 0
      %469 = vmatpush.msra.mxu0 0.0
      %470 = vmatpush.msra.mxu0 0.0
      %471 = vmatpush.msra.mxu0 0.0
      %472 = vmatpush.msra.mxu0 0.0
      %473 = vmatpush.msra.mxu0 0.0
      %474 = vmatpush.msra.mxu0 0.0
      %475 = vmatpush.msra.mxu0 0.0
      %476 = vmatpush.msra.mxu0 0.0
      %477 = vmatpush.msra.mxu0 0.0
      %478 = vmatpush.msra.mxu0 0.0
      %479 = vmatpush.msra.mxu0 0.0
      %480 = vmatpush.msra.mxu0 0.0
      %481 = vmatpush.msra.mxu0 0.0
      %482 = vmatpush.msra.mxu0 0.0
      %483 = vmatpush.msra.mxu0 0.0
      %484 = vmatpush.msra.mxu0 %v464
      %485 = vmatmul.f32.gmra.mxu0 %v467
      %v486 = vpop.f32.mrf.mxu0
      %v487 = vadd.f32 0.0, %v486
      %488 = vdwg.mxu0
      %490 = vrot.lane.b32.xlu0 %v355, 16
      %v491 = vpop.permute.xlu0 %490
      %494 = vrot.lane.b32.xlu0 %v421, 32
      %v495 = vpop.permute.xlu0 %494
      %498 = vrot.lane.b32.xlu0 %v487, 48
      %v499 = vpop.permute.xlu0 %498
      %v501 = vsel %vm228, %v288, %v491
      %v502 = vsel %vm175, %v501, %v495
      %vm503 = vcmask 392192
      %v504 = vsel %vm503, %v502, %v499
      %v505 = vld [vmem:[%s2] sm:$0xff]
      %v506 = vld [vmem:[%s2 + $0x8] sm:$0xff]
      %v507 = vld [vmem:[%s2 + $0x10] sm:$0xff]
      %v508 = vld [vmem:[%s2 + $0x18] sm:$0xff]
      %v509 = vld [vmem:[%s2 + $0x20] sm:$0xff]
      %v510 = vld [vmem:[%s2 + $0x28] sm:$0xff]
      %v511 = vld [vmem:[%s2 + $0x30] sm:$0xff]
      %v512 = vld [vmem:[%s2 + $0x38] sm:$0xff]
      %vm513 = vcmask 523264
      %v515 = vsel %vm513, %v504, 0
      %517 = vmatpush.msra.mxu0 0.0
      %518 = vmatpush.msra.mxu0 0.0
      %519 = vmatpush.msra.mxu0 0.0
      %520 = vmatpush.msra.mxu0 0.0
      %521 = vmatpush.msra.mxu0 0.0
      %522 = vmatpush.msra.mxu0 0.0
      %523 = vmatpush.msra.mxu0 0.0
      %524 = vmatpush.msra.mxu0 0.0
      %525 = vmatpush.msra.mxu0 %v512
      %526 = vmatpush.msra.mxu0 %v511
      %527 = vmatpush.msra.mxu0 %v510
      %528 = vmatpush.msra.mxu0 %v509
      %529 = vmatpush.msra.mxu0 %v508
      %530 = vmatpush.msra.mxu0 %v507
      %531 = vmatpush.msra.mxu0 %v506
      %532 = vmatpush.msra.mxu0 %v505
      %533 = vmatmul.f32.gmra.mxu0 %v515
      %v534 = vpop.f32.mrf.mxu0
      %v535 = vadd.f32 %v166, %v534
      %536 = vdwg.mxu0
      %537 = vst.msk [vmem:[%s165] sm:$0xff] %vm175, %v535
      %p538 = scmp.lt.s32.totalorder %s14, 1
      %s539 = scalar_select %p538, %s14, 1
      %s540 = smul.addr %s539, 8
      %s541 = scalar_lea.vmem %s3, %s540
      // Predicated region
      $region33: #{transformer_forward.5} parent=31 // pred_check
        %p542 = pneg %p100
      $region34: #{transformer_forward.5} parent=31 // pred_check_branch
        %544 = sbr.rel (%p542) target = $region36
      $region35: #{transformer_forward.5} parent=31 // pred_region
        _
      $region36: #{transformer_forward.5} parent=31 // pred_fallthru
        _
    $region32: #{transformer_forward.5} parent=5 // pred_fallthru
      _
    %p545 = scmp.le.s32.totalorder 2, %s9
    // Predicated region
    $region37: #{transformer_forward.5} parent=5 // pred_check
      %p546 = pneg %p545
    $region38: #{transformer_forward.5} parent=5 // pred_check_branch
      %548 = sbr.rel (%p546) target = $region40
    $region39: #{transformer_forward.5} parent=5 // pred_region
      %s549 = ssub.s32 %s9, 2
      // Predicated region
      $region41: #{transformer_forward.5} parent=39 // pred_check
        %p550 = pneg %p106
      $region42: #{transformer_forward.5} parent=39 // pred_check_branch
        %552 = sbr.rel (%p550) target = $region44
      $region43: #{transformer_forward.5} parent=39 // pred_region
        %p553 = scmp.lt.s32.totalorder %s15, 1
        %s554 = scalar_select %p553, %s15, 1
        %s555 = smul.addr %s554, 8
        %s556 = scalar_lea.vmem %s3, %s555
      $region44: #{transformer_forward.5} parent=39 // pred_fallthru
        _
    $region40: #{transformer_forward.5} parent=5 // pred_fallthru
      _
  $region6: #{transformer_forward.5} parent=0 // loop_footer
    %s13 = sadd.s32 1, %s9
  $region7: #{transformer_forward.5} parent=0 // loop_footer_branch
    %8 = sbr.rel target = $region3
  $region8: #{transformer_forward.5} parent=0 // loop_exit
    _

</llo_original>
